<compile_context>
chip_gen: v7x
topology: tpu7x:2x2x1
jax: 0.10.0
libtpu: 0.0.40
codegen_flags: <defaults>
</compile_context>

<pallas_src>
import functools

import jax
import jax.numpy as jnp
from jax.experimental import pallas as pl
from jax.experimental.pallas import tpu as pltpu

IN_FEAT = 400
H1 = 10
H2 = 5


def _mlp_kernel(x_ref, w1_ref, b1_ref, w2_ref, b2_ref, w3_ref, b3_ref, o_ref):
    # Entire 3-layer MLP fused in one kernel body (3 matmuls + tanh).
    x = x_ref[...].astype(jnp.float32)

    h1 = jnp.dot(x, w1_ref[...], preferred_element_type=jnp.float32) + b1_ref[...]
    h1 = jnp.tanh(h1)

    h2 = jnp.dot(h1, w2_ref[...], preferred_element_type=jnp.float32) + b2_ref[...]
    h2 = jnp.tanh(h2)

    h3 = jnp.dot(h2, w3_ref[...], preferred_element_type=jnp.float32) + b3_ref[...]
    h3 = jnp.tanh(h3)

    o_ref[...] = h3.astype(o_ref.dtype)


@functools.partial(jax.jit, static_argnames=("block_m",))
def reg_model3_forward(x, w1, b1, w2, b2, w3, b3, *, block_m=1024):
    """x: (B, in_feat). Returns (B, in_feat) in x.dtype.

    block_m: batch tile size. Large tiles amortize the ~0.35 us per-grid-step
    overhead on this purely bandwidth-bound kernel; it is clamped to B so small
    batches still produce a single full-extent block. Values up to ~4096 stay
    within VMEM limits on all generations (v7x included).
    """
    B, in_feat = x.shape

    # Clamp the tile to the batch size; Pallas handles a ragged last tile.
    bm = min(block_m, B)
    grid = (pl.cdiv(B, bm),)

    # Weights / biases are tiny (~26 KB total): constant index_map keeps them
    # resident in VMEM across all grid steps (no per-step re-DMA). Only the batch
    # dimension of x / out is tiled.
    def full(shape):
        return pl.BlockSpec(shape, lambda i: tuple(0 for _ in shape))

    param_bytes = sum(
        p.size * p.dtype.itemsize for p in (w1, b1, w2, b2, w3, b3)
    )
    io_bytes = x.size * x.dtype.itemsize * 2  # read x + write out
    cost = pl.CostEstimate(
        flops=2 * B * (in_feat * H1 + H1 * H2 + H2 * in_feat),
        transcendentals=B * (H1 + H2 + in_feat),
        bytes_accessed=io_bytes + param_bytes,
    )

    return pl.pallas_call(
        _mlp_kernel,
        out_shape=jax.ShapeDtypeStruct((B, in_feat), x.dtype),
        grid_spec=pltpu.PrefetchScalarGridSpec(
            num_scalar_prefetch=0,
            grid=grid,
            in_specs=[
                pl.BlockSpec((bm, in_feat), lambda i: (i, 0)),  # x tile
                full(w1.shape),  # (in_feat, H1)
                full(b1.shape),  # (1, H1)
                full(w2.shape),  # (H1, H2)
                full(b2.shape),  # (1, H2)
                full(w3.shape),  # (H2, in_feat)
                full(b3.shape),  # (1, in_feat)
            ],
            out_specs=pl.BlockSpec((bm, in_feat), lambda i: (i, 0)),
        ),
        compiler_params=pltpu.CompilerParams(
            # "parallel" lets v7x shard batch tiles across its 2 TensorCores;
            # measured-neutral on single-TC v5e/v6e.
            dimension_semantics=("parallel",),
        ),
        cost_estimate=cost,
    )(x, w1, b1, w2, b2, w3, b3)


def init_params(key, in_feat=IN_FEAT):
    """Deterministic init mimicking torch.nn.Linear default (uniform +/-1/sqrt(fan_in)).

    Weights are returned already transposed to (in, out) for the kernel.
    """
    ks = jax.random.split(key, 6)

    def linear(kw, kb, fan_in, fan_out):
        bound = 1.0 / jnp.sqrt(fan_in)
        w = jax.random.uniform(kw, (fan_in, fan_out), jnp.float32, -bound, bound)
        b = jax.random.uniform(kb, (1, fan_out), jnp.float32, -bound, bound)
        return w, b

    w1, b1 = linear(ks[0], ks[1], in_feat, H1)
    w2, b2 = linear(ks[2], ks[3], H1, H2)
    w3, b3 = linear(ks[4], ks[5], H2, in_feat)
    return w1, b1, w2, b2, w3, b3


def reference_forward(x, w1, b1, w2, b2, w3, b3):
    h = jnp.tanh(x @ w1 + b1)
    h = jnp.tanh(h @ w2 + b2)
    return jnp.tanh(h @ w3 + b3)


if __name__ == "__main__":
    key = jax.random.PRNGKey(0)
    k_x, k_p = jax.random.split(key)

    # Small but multi-tile test: B=256 with block_m=128 -> 2 grid steps, exercising
    # both the pipelined batch tiling and the resident-weight path.
    B = 256
    x = jax.random.normal(k_x, (B, IN_FEAT), jnp.float32)
    params = init_params(k_p, IN_FEAT)

    out = reg_model3_forward(x, *params, block_m=128)
    out = jax.block_until_ready(out)

    ref = reference_forward(x, *params)
    assert out.shape == (B, IN_FEAT)
    assert jnp.allclose(out, ref, atol=1e-5, rtol=1e-5), "mismatch vs JAX reference"

    # Also sanity-check the default large-tile path (single full-extent block).
    out2 = jax.block_until_ready(reg_model3_forward(x, *params))
    assert jnp.allclose(out2, ref, atol=1e-5, rtol=1e-5), "mismatch (default tile)"

    print("KERNEL_OK")
</pallas_src>

<mosaic_0001>
module attributes {stable_mosaic.version = 11 : i64} {
  func.func @_mlp_kernel(%arg0: i32, %arg1: memref<128x400xf32, #tpu.memory_space<vmem>>, %arg2: memref<400x10xf32, #tpu.memory_space<vmem>>, %arg3: memref<1x10xf32, #tpu.memory_space<vmem>>, %arg4: memref<10x5xf32, #tpu.memory_space<vmem>>, %arg5: memref<1x5xf32, #tpu.memory_space<vmem>>, %arg6: memref<5x400xf32, #tpu.memory_space<vmem>>, %arg7: memref<1x400xf32, #tpu.memory_space<vmem>>, %arg8: memref<128x400xf32, #tpu.memory_space<vmem>>) attributes {dimension_semantics = [#tpu.dimension_semantics<parallel>], iteration_bounds = array<i64: 2>, scalar_prefetch = 0 : i64, scratch_operands = 0 : i64, tpu.core_type = #tpu.core_type<tc>, window_params = [{transform_indices = @transform_0, window_bounds = array<i64: 128, 400>}, {pipeline_mode = #tpu.pipeline_mode<synchronous>, transform_indices = @transform_1, window_bounds = array<i64: 400, 10>}, {pipeline_mode = #tpu.pipeline_mode<synchronous>, transform_indices = @transform_2, window_bounds = array<i64: 1, 10>}, {pipeline_mode = #tpu.pipeline_mode<synchronous>, transform_indices = @transform_3, window_bounds = array<i64: 10, 5>}, {pipeline_mode = #tpu.pipeline_mode<synchronous>, transform_indices = @transform_4, window_bounds = array<i64: 1, 5>}, {pipeline_mode = #tpu.pipeline_mode<synchronous>, transform_indices = @transform_5, window_bounds = array<i64: 5, 400>}, {pipeline_mode = #tpu.pipeline_mode<synchronous>, transform_indices = @transform_6, window_bounds = array<i64: 1, 400>}, {transform_indices = @transform_7, window_bounds = array<i64: 128, 400>}]} {
    %c0 = arith.constant 0 : index
    %c0_0 = arith.constant 0 : index
    %0 = vector.load %arg1[%c0, %c0_0] : memref<128x400xf32, #tpu.memory_space<vmem>>, vector<128x400xf32>
    %c0_1 = arith.constant 0 : index
    %c0_2 = arith.constant 0 : index
    %1 = vector.load %arg2[%c0_1, %c0_2] : memref<400x10xf32, #tpu.memory_space<vmem>>, vector<400x10xf32>
    %cst = arith.constant dense<0.000000e+00> : vector<128x10xf32>
    %2 = tpu.matmul %0, %1, %cst {dimension_numbers = #tpu.dot_dimension_numbers<[1], [0], [0], [1], [0, 0, 1, 1], [], []>} : vector<128x400xf32>, vector<400x10xf32>, vector<128x10xf32> -> vector<128x10xf32>
    %c0_3 = arith.constant 0 : index
    %c0_4 = arith.constant 0 : index
    %3 = vector.load %arg3[%c0_3, %c0_4] : memref<1x10xf32, #tpu.memory_space<vmem>>, vector<1x10xf32>
    %4 = vector.broadcast %3 : vector<1x10xf32> to vector<128x10xf32>
    %5 = arith.addf %2, %4 : vector<128x10xf32>
    %6 = math.tanh %5 : vector<128x10xf32>
    %c0_5 = arith.constant 0 : index
    %c0_6 = arith.constant 0 : index
    %7 = vector.load %arg4[%c0_5, %c0_6] : memref<10x5xf32, #tpu.memory_space<vmem>>, vector<10x5xf32>
    %cst_7 = arith.constant dense<0.000000e+00> : vector<128x5xf32>
    %8 = tpu.matmul %6, %7, %cst_7 {dimension_numbers = #tpu.dot_dimension_numbers<[1], [0], [0], [1], [0, 0, 1, 1], [], []>} : vector<128x10xf32>, vector<10x5xf32>, vector<128x5xf32> -> vector<128x5xf32>
    %c0_8 = arith.constant 0 : index
    %c0_9 = arith.constant 0 : index
    %9 = vector.load %arg5[%c0_8, %c0_9] : memref<1x5xf32, #tpu.memory_space<vmem>>, vector<1x5xf32>
    %10 = vector.broadcast %9 : vector<1x5xf32> to vector<128x5xf32>
    %11 = arith.addf %8, %10 : vector<128x5xf32>
    %12 = math.tanh %11 : vector<128x5xf32>
    %c0_10 = arith.constant 0 : index
    %c0_11 = arith.constant 0 : index
    %13 = vector.load %arg6[%c0_10, %c0_11] : memref<5x400xf32, #tpu.memory_space<vmem>>, vector<5x400xf32>
    %cst_12 = arith.constant dense<0.000000e+00> : vector<128x400xf32>
    %14 = tpu.matmul %12, %13, %cst_12 {dimension_numbers = #tpu.dot_dimension_numbers<[1], [0], [0], [1], [0, 0, 1, 1], [], []>} : vector<128x5xf32>, vector<5x400xf32>, vector<128x400xf32> -> vector<128x400xf32>
    %c0_13 = arith.constant 0 : index
    %c0_14 = arith.constant 0 : index
    %15 = vector.load %arg7[%c0_13, %c0_14] : memref<1x400xf32, #tpu.memory_space<vmem>>, vector<1x400xf32>
    %16 = vector.broadcast %15 : vector<1x400xf32> to vector<128x400xf32>
    %17 = arith.addf %14, %16 : vector<128x400xf32>
    %18 = math.tanh %17 : vector<128x400xf32>
    %c0_15 = arith.constant 0 : index
    %c0_16 = arith.constant 0 : index
    %19 = vector.load %arg8[%c0_15, %c0_16] : memref<128x400xf32, #tpu.memory_space<vmem>>, vector<128x400xf32>
    tpu.vector_store %arg8[%c0_15, %c0_16], %18 {strides = array<i32>} : memref<128x400xf32, #tpu.memory_space<vmem>>, vector<128x400xf32>,
    return
  }
  func.func @transform_0(%arg0: i32) -> (i32, i32) {
    %c0_i32 = arith.constant 0 : i32
    %c0_i32_0 = arith.constant 0 : i32
    return %arg0, %c0_i32 : i32, i32
  }
  func.func @transform_1(%arg0: i32) -> (i32, i32) {
    %c0_i32 = arith.constant 0 : i32
    %c0_i32_0 = arith.constant 0 : i32
    %c0_i32_1 = arith.constant 0 : i32
    return %c0_i32, %c0_i32_0 : i32, i32
  }
  func.func @transform_2(%arg0: i32) -> (i32, i32) {
    %c0_i32 = arith.constant 0 : i32
    %c0_i32_0 = arith.constant 0 : i32
    %c0_i32_1 = arith.constant 0 : i32
    return %c0_i32, %c0_i32_0 : i32, i32
  }
  func.func @transform_3(%arg0: i32) -> (i32, i32) {
    %c0_i32 = arith.constant 0 : i32
    %c0_i32_0 = arith.constant 0 : i32
    %c0_i32_1 = arith.constant 0 : i32
    return %c0_i32, %c0_i32_0 : i32, i32
  }
  func.func @transform_4(%arg0: i32) -> (i32, i32) {
    %c0_i32 = arith.constant 0 : i32
    %c0_i32_0 = arith.constant 0 : i32
    %c0_i32_1 = arith.constant 0 : i32
    return %c0_i32, %c0_i32_0 : i32, i32
  }
  func.func @transform_5(%arg0: i32) -> (i32, i32) {
    %c0_i32 = arith.constant 0 : i32
    %c0_i32_0 = arith.constant 0 : i32
    %c0_i32_1 = arith.constant 0 : i32
    return %c0_i32, %c0_i32_0 : i32, i32
  }
  func.func @transform_6(%arg0: i32) -> (i32, i32) {
    %c0_i32 = arith.constant 0 : i32
    %c0_i32_0 = arith.constant 0 : i32
    %c0_i32_1 = arith.constant 0 : i32
    return %c0_i32, %c0_i32_0 : i32, i32
  }
  func.func @transform_7(%arg0: i32) -> (i32, i32) {
    %c0_i32 = arith.constant 0 : i32
    %c0_i32_0 = arith.constant 0 : i32
    return %arg0, %c0_i32 : i32, i32
  }
}

</mosaic_0001>

<llo_original>
// kernel: reg_model3_forward.1
$region0: #{reg_model3_forward.1}
  #allocation0 [shape = 'u32[]', space=smem, size = 0x4, offset = 0x4, fixed_abs, tag = 'smem constant byte address 0x4 - core index']
  #allocation1 [shape = 'u32[144,128]{1,0:T(1,128)}', space=vmem, size = 0x12000, scoped, tag = 'internal scratch']
  %s0 = inlined_call_operand.vmem [shape: f32[256,400], index: 0, kind: input, shape index: {}]
  %s1 = inlined_call_operand.vmem [shape: f32[400,10], index: 1, kind: input, shape index: {}]
  %s2 = inlined_call_operand.vmem [shape: f32[1,10], index: 2, kind: input, shape index: {}]
  %s3 = inlined_call_operand.vmem [shape: f32[10,5], index: 3, kind: input, shape index: {}]
  %s4 = inlined_call_operand.vmem [shape: f32[1,5], index: 4, kind: input, shape index: {}]
  %s5 = inlined_call_operand.vmem [shape: f32[5,400], index: 5, kind: input, shape index: {}]
  %s6 = inlined_call_operand.vmem [shape: f32[1,400], index: 6, kind: input, shape index: {}]
  %s7 = inlined_call_operand.vmem [shape: f32[256,400], index: 7, kind: output, shape index: {}]
  %s8 = sld [smem:[#allocation0]]
  $region61: #{reg_model3_forward.1} parent=0
    _
  %s10 = ssub.s32 1, %s8
  %s11 = scalar_select 0, %s10, %s8
  loop: start=0, step=1, limit=4
  $region2: #{reg_model3_forward.1} parent=0 // loop_pre_header
    _
  $region3: #{reg_model3_forward.1} parent=0 // loop_header
    %s13 = sphi 0, %s17
    %p14 = scmp.ge.s32.totalorder %s13, 4
    %s23 = sphi 0, %s25
    %s26 = sphi 0, %s23
    %s27 = sphi 0, %s26
    %s43 = sphi 0, %s27
    %s47 = sphi 0, %s47
    %s49 = sphi 0, %s47
    %s50 = sphi 0, %s49
    %s64 = sphi 0, %s50
    %s68 = sphi 0, %s68
    %s70 = sphi 0, %s68
    %s71 = sphi 0, %s70
    %s85 = sphi 0, %s71
    %s89 = sphi 0, %s89
    %s91 = sphi 0, %s89
    %s92 = sphi 0, %s91
    %s106 = sphi 0, %s92
    %s110 = sphi 0, %s110
    %s112 = sphi 0, %s110
    %s113 = sphi 0, %s112
    %s127 = sphi 0, %s113
    %s131 = sphi 0, %s131
    %s133 = sphi 0, %s131
    %s134 = sphi 0, %s133
    %s148 = sphi 0, %s134
    %s152 = sphi 0, %s152
    %s154 = sphi 0, %s152
    %s155 = sphi 0, %s154
    %s169 = sphi 0, %s155
    %s175 = sphi 0, %s177
    %s178 = sphi 0, %s175
    %s179 = sphi 0, %s178
    %s195 = sphi 0, %s179
  $region4: #{reg_model3_forward.1} parent=0 // loop_header_branch
    %16 = sbr.rel (%p14) target = $region8
  $region5: #{reg_model3_forward.1} parent=0 // loop_body
    %s18 = ssub.s32 %s13, 1
    %s19 = ssub.s32 %s13, 2
    %s20 = sadd.s32 %s13, 1
    %s21 = ssub.s32 %s13, %s20
    %p22 = scmp.eq.s32.totalorder %s21, 0
    %s24 = sadd.s32 %s23, 1
    %s25 = scalar_select %p22, %s23, %s24
    %p28 = pneg %p22
    %p29 = scmp.eq.s32.totalorder %s13, 1
    %p30 = por %p28, %p29
    %p31 = scmp.ne.s32.totalorder %s23, %s26
    %p32 = scmp.eq.s32.totalorder %s13, 0
    %p33 = por %p31, %p32
    %p34 = scmp.ne.s32.totalorder %s23, %s26
    %p35 = scmp.eq.s32.totalorder %s18, 1
    %p36 = por %p34, %p35
    %p37 = scmp.ne.s32.totalorder %s26, %s27
    %p38 = scmp.eq.s32.totalorder %s18, 0
    %p39 = por %p37, %p38
    %p40 = scmp.ne.s32.totalorder %s26, %s27
    %p41 = scmp.eq.s32.totalorder %s19, 1
    %p42 = por %p40, %p41
    %p44 = scmp.ne.s32.totalorder %s27, %s43
    %p45 = scmp.eq.s32.totalorder %s19, 0
    %p46 = por %p44, %p45
    %s48 = sadd.s32 %s47, 1
    %p51 = scmp.eq.s32.totalorder %s13, 1
    %p52 = scmp.ne.s32.totalorder %s47, %s49
    %p53 = scmp.eq.s32.totalorder %s13, 0
    %p54 = por %p52, %p53
    %p55 = scmp.ne.s32.totalorder %s47, %s49
    %p56 = scmp.eq.s32.totalorder %s18, 1
    %p57 = por %p55, %p56
    %p58 = scmp.ne.s32.totalorder %s49, %s50
    %p59 = scmp.eq.s32.totalorder %s18, 0
    %p60 = por %p58, %p59
    %p61 = scmp.ne.s32.totalorder %s49, %s50
    %p62 = scmp.eq.s32.totalorder %s19, 1
    %p63 = por %p61, %p62
    %p65 = scmp.ne.s32.totalorder %s50, %s64
    %p66 = scmp.eq.s32.totalorder %s19, 0
    %p67 = por %p65, %p66
    %s69 = sadd.s32 %s68, 1
    %p72 = scmp.eq.s32.totalorder %s13, 1
    %p73 = scmp.ne.s32.totalorder %s68, %s70
    %p74 = scmp.eq.s32.totalorder %s13, 0
    %p75 = por %p73, %p74
    %p76 = scmp.ne.s32.totalorder %s68, %s70
    %p77 = scmp.eq.s32.totalorder %s18, 1
    %p78 = por %p76, %p77
    %p79 = scmp.ne.s32.totalorder %s70, %s71
    %p80 = scmp.eq.s32.totalorder %s18, 0
    %p81 = por %p79, %p80
    %p82 = scmp.ne.s32.totalorder %s70, %s71
    %p83 = scmp.eq.s32.totalorder %s19, 1
    %p84 = por %p82, %p83
    %p86 = scmp.ne.s32.totalorder %s71, %s85
    %p87 = scmp.eq.s32.totalorder %s19, 0
    %p88 = por %p86, %p87
    %s90 = sadd.s32 %s89, 1
    %p93 = scmp.eq.s32.totalorder %s13, 1
    %p94 = scmp.ne.s32.totalorder %s89, %s91
    %p95 = scmp.eq.s32.totalorder %s13, 0
    %p96 = por %p94, %p95
    %p97 = scmp.ne.s32.totalorder %s89, %s91
    %p98 = scmp.eq.s32.totalorder %s18, 1
    %p99 = por %p97, %p98
    %p100 = scmp.ne.s32.totalorder %s91, %s92
    %p101 = scmp.eq.s32.totalorder %s18, 0
    %p102 = por %p100, %p101
    %p103 = scmp.ne.s32.totalorder %s91, %s92
    %p104 = scmp.eq.s32.totalorder %s19, 1
    %p105 = por %p103, %p104
    %p107 = scmp.ne.s32.totalorder %s92, %s106
    %p108 = scmp.eq.s32.totalorder %s19, 0
    %p109 = por %p107, %p108
    %s111 = sadd.s32 %s110, 1
    %p114 = scmp.eq.s32.totalorder %s13, 1
    %p115 = scmp.ne.s32.totalorder %s110, %s112
    %p116 = scmp.eq.s32.totalorder %s13, 0
    %p117 = por %p115, %p116
    %p118 = scmp.ne.s32.totalorder %s110, %s112
    %p119 = scmp.eq.s32.totalorder %s18, 1
    %p120 = por %p118, %p119
    %p121 = scmp.ne.s32.totalorder %s112, %s113
    %p122 = scmp.eq.s32.totalorder %s18, 0
    %p123 = por %p121, %p122
    %p124 = scmp.ne.s32.totalorder %s112, %s113
    %p125 = scmp.eq.s32.totalorder %s19, 1
    %p126 = por %p124, %p125
    %p128 = scmp.ne.s32.totalorder %s113, %s127
    %p129 = scmp.eq.s32.totalorder %s19, 0
    %p130 = por %p128, %p129
    %s132 = sadd.s32 %s131, 1
    %p135 = scmp.eq.s32.totalorder %s13, 1
    %p136 = scmp.ne.s32.totalorder %s131, %s133
    %p137 = scmp.eq.s32.totalorder %s13, 0
    %p138 = por %p136, %p137
    %p139 = scmp.ne.s32.totalorder %s131, %s133
    %p140 = scmp.eq.s32.totalorder %s18, 1
    %p141 = por %p139, %p140
    %p142 = scmp.ne.s32.totalorder %s133, %s134
    %p143 = scmp.eq.s32.totalorder %s18, 0
    %p144 = por %p142, %p143
    %p145 = scmp.ne.s32.totalorder %s133, %s134
    %p146 = scmp.eq.s32.totalorder %s19, 1
    %p147 = por %p145, %p146
    %p149 = scmp.ne.s32.totalorder %s134, %s148
    %p150 = scmp.eq.s32.totalorder %s19, 0
    %p151 = por %p149, %p150
    %s153 = sadd.s32 %s152, 1
    %p156 = scmp.eq.s32.totalorder %s13, 1
    %p157 = scmp.ne.s32.totalorder %s152, %s154
    %p158 = scmp.eq.s32.totalorder %s13, 0
    %p159 = por %p157, %p158
    %p160 = scmp.ne.s32.totalorder %s152, %s154
    %p161 = scmp.eq.s32.totalorder %s18, 1
    %p162 = por %p160, %p161
    %p163 = scmp.ne.s32.totalorder %s154, %s155
    %p164 = scmp.eq.s32.totalorder %s18, 0
    %p165 = por %p163, %p164
    %p166 = scmp.ne.s32.totalorder %s154, %s155
    %p167 = scmp.eq.s32.totalorder %s19, 1
    %p168 = por %p166, %p167
    %p170 = scmp.ne.s32.totalorder %s155, %s169
    %p171 = scmp.eq.s32.totalorder %s19, 0
    %p172 = por %p170, %p171
    %s173 = ssub.s32 %s13, %s20
    %p174 = scmp.eq.s32.totalorder %s173, 0
    %s176 = sadd.s32 %s175, 1
    %s177 = scalar_select %p174, %s175, %s176
    %p180 = pneg %p174
    %p181 = scmp.eq.s32.totalorder %s13, 1
    %p182 = por %p180, %p181
    %p183 = scmp.ne.s32.totalorder %s175, %s178
    %p184 = scmp.eq.s32.totalorder %s13, 0
    %p185 = por %p183, %p184
    %p186 = scmp.ne.s32.totalorder %s175, %s178
    %p187 = scmp.eq.s32.totalorder %s18, 1
    %p188 = por %p186, %p187
    %p189 = scmp.ne.s32.totalorder %s178, %s179
    %p190 = scmp.eq.s32.totalorder %s18, 0
    %p191 = por %p189, %p190
    %p192 = scmp.ne.s32.totalorder %s178, %s179
    %p193 = scmp.eq.s32.totalorder %s19, 1
    %p194 = por %p192, %p193
    %p196 = scmp.ne.s32.totalorder %s179, %s195
    %p197 = scmp.eq.s32.totalorder %s19, 0
    %p198 = por %p196, %p197
    %p199 = scmp.le.s32.totalorder 1, %s13
    %p200 = scmp.lt.s32.totalorder %s13, 3
    %p201 = pnand %p199, %p200
    %p202 = pneg %p201
    // Predicated region
    $region9: #{reg_model3_forward.1} parent=5 // pred_check
      _
    $region10: #{reg_model3_forward.1} parent=5 // pred_check_branch
      %204 = sbr.rel (%p201) target = $region12
    $region11: #{reg_model3_forward.1} parent=5 // pred_region
      %s205 = ssub.s32 %s13, 1
      // Predicated region
      $region13: #{reg_model3_forward.1} parent=11 // pred_check
        %p206 = pneg %p60
      $region14: #{reg_model3_forward.1} parent=11 // pred_check_branch
        %208 = sbr.rel (%p206) target = $region16
      $region15: #{reg_model3_forward.1} parent=11 // pred_region
        _
      $region16: #{reg_model3_forward.1} parent=11 // pred_fallthru
        _
      // Predicated region
      $region17: #{reg_model3_forward.1} parent=11 // pred_check
        %p209 = pneg %p81
      $region18: #{reg_model3_forward.1} parent=11 // pred_check_branch
        %211 = sbr.rel (%p209) target = $region20
      $region19: #{reg_model3_forward.1} parent=11 // pred_region
        _
      $region20: #{reg_model3_forward.1} parent=11 // pred_fallthru
        _
      // Predicated region
      $region21: #{reg_model3_forward.1} parent=11 // pred_check
        %p212 = pneg %p102
      $region22: #{reg_model3_forward.1} parent=11 // pred_check_branch
        %214 = sbr.rel (%p212) target = $region24
      $region23: #{reg_model3_forward.1} parent=11 // pred_region
        _
      $region24: #{reg_model3_forward.1} parent=11 // pred_fallthru
        _
      // Predicated region
      $region25: #{reg_model3_forward.1} parent=11 // pred_check
        %p215 = pneg %p123
      $region26: #{reg_model3_forward.1} parent=11 // pred_check_branch
        %217 = sbr.rel (%p215) target = $region28
      $region27: #{reg_model3_forward.1} parent=11 // pred_region
        _
      $region28: #{reg_model3_forward.1} parent=11 // pred_fallthru
        _
      // Predicated region
      $region29: #{reg_model3_forward.1} parent=11 // pred_check
        %p218 = pneg %p144
      $region30: #{reg_model3_forward.1} parent=11 // pred_check_branch
        %220 = sbr.rel (%p218) target = $region32
      $region31: #{reg_model3_forward.1} parent=11 // pred_region
        _
      $region32: #{reg_model3_forward.1} parent=11 // pred_fallthru
        _
      // Predicated region
      $region33: #{reg_model3_forward.1} parent=11 // pred_check
        %p221 = pneg %p165
      $region34: #{reg_model3_forward.1} parent=11 // pred_check_branch
        %223 = sbr.rel (%p221) target = $region36
      $region35: #{reg_model3_forward.1} parent=11 // pred_region
        _
      $region36: #{reg_model3_forward.1} parent=11 // pred_fallthru
        _
    $region12: #{reg_model3_forward.1} parent=5 // pred_fallthru
      _
    %p224 = scmp.lt.s32.totalorder %s13, 2
    // Predicated region
    $region37: #{reg_model3_forward.1} parent=5 // pred_check
      %p225 = pneg %p224
    $region38: #{reg_model3_forward.1} parent=5 // pred_check_branch
      %227 = sbr.rel (%p225) target = $region40
    $region39: #{reg_model3_forward.1} parent=5 // pred_region
      // Predicated region
      $region41: #{reg_model3_forward.1} parent=39 // pred_check
        %p228 = pneg %p33
      $region42: #{reg_model3_forward.1} parent=39 // pred_check_branch
        %230 = sbr.rel (%p228) target = $region44
      $region43: #{reg_model3_forward.1} parent=39 // pred_region
        %s231 = smul.u32 16, %s13
        %p232 = scmp.lt.s32.totalorder %s231, 31
        %s233 = scalar_select %p232, %s231, 31
        %s234 = smul.addr %s233, 4
        %s235 = smul.addr %s234, 8
        %s236 = scalar_lea.vmem %s0, %s235
        %s237 = smul.u32 16, %s13
      $region44: #{reg_model3_forward.1} parent=39 // pred_fallthru
        _
    $region40: #{reg_model3_forward.1} parent=5 // pred_fallthru
      _
    %p238 = scmp.le.s32.totalorder 1, %s13
    %p239 = scmp.lt.s32.totalorder %s13, 3
    %p240 = pnand %p238, %p239
    %p241 = pneg %p240
    // Predicated region
    $region45: #{reg_model3_forward.1} parent=5 // pred_check
      _
    $region46: #{reg_model3_forward.1} parent=5 // pred_check_branch
      %243 = sbr.rel (%p240) target = $region48
    $region47: #{reg_model3_forward.1} parent=5 // pred_region
      %s244 = ssub.s32 %s13, 1
      %s245 = smul.u32 16, %s18
      %p246 = scmp.lt.s32.totalorder %s245, 31
      %s247 = scalar_select %p246, %s245, 31
      %s248 = smul.addr %s247, 4
      %s249 = smul.addr %s248, 8
      %s250 = scalar_lea.vmem %s0, %s249
      %p251 = pneg %p39
      %p252 = pneg %p36
      %p253 = pneg %p60
      %p254 = pneg %p57
      %p255 = pneg %p81
      %p256 = pneg %p78
      %p257 = pneg %p102
      %p258 = pneg %p99
      %p259 = pneg %p123
      %p260 = pneg %p120
      %p261 = pneg %p144
      %p262 = pneg %p141
      %p263 = pneg %p165
      %p264 = pneg %p162
      %p265 = pneg %p191
      %p266 = pneg %p188
      %s267 = smul.u32 16, %s18
      %p268 = scmp.lt.s32.totalorder %s267, 31
      %s269 = scalar_select %p268, %s267, 31
      %s270 = smul.addr %s269, 4
      %s271 = smul.addr %s270, 8
      %s272 = scalar_lea.vmem %s7, %s271
      %s273 = smul.u32 16, %s18
      %p274 = scmp.lt.s32.totalorder %s273, 31
      %s275 = scalar_select %p274, %s273, 31
      %s276 = smul.addr %s275, 4
      %s277 = smul.addr %s276, 8
      %s278 = scalar_lea.vmem %s0, %s277
      %s279 = smul.u32 16, %s18
      %s280 = smul.u32 16, %s18
      %p281 = scmp.lt.s32.totalorder %s280, 31
      %s282 = scalar_select %p281, %s280, 31
      %s283 = smul.addr %s282, 4
      %s284 = smul.addr %s283, 8
      %s285 = scalar_lea.vmem %s7, %s284
      %s286 = smul.u32 16, %s18
      %v287 = vld [vmem:[%s278] sm:$0xff]
      %v288 = vld [vmem:[%s278 + $0x8] sm:$0xff]
      %v289 = vld [vmem:[%s278 + $0x10] sm:$0xff]
      %v290 = vld [vmem:[%s278 + $0x18] sm:$0xff]
      %v291 = vld [vmem:[%s278 + $0x20] sm:$0xff]
      %v292 = vld [vmem:[%s278 + $0x28] sm:$0xff]
      %v293 = vld [vmem:[%s278 + $0x30] sm:$0xff]
      %v294 = vld [vmem:[%s278 + $0x38] sm:$0xff]
      %v295 = vld [vmem:[%s278 + $0x40] sm:$0xff]
      %v296 = vld [vmem:[%s278 + $0x48] sm:$0xff]
      %v297 = vld [vmem:[%s278 + $0x50] sm:$0xff]
      %v298 = vld [vmem:[%s278 + $0x58] sm:$0xff]
      %v299 = vld [vmem:[%s278 + $0x60] sm:$0xff]
      %v300 = vld [vmem:[%s278 + $0x68] sm:$0xff]
      %v301 = vld [vmem:[%s278 + $0x70] sm:$0xff]
      %v302 = vld [vmem:[%s278 + $0x78] sm:$0xff]
      %v303 = vld [vmem:[%s278 + $0x80] sm:$0xff]
      %v304 = vld [vmem:[%s278 + $0x88] sm:$0xff]
      %v305 = vld [vmem:[%s278 + $0x90] sm:$0xff]
      %v306 = vld [vmem:[%s278 + $0x98] sm:$0xff]
      %v307 = vld [vmem:[%s278 + $0xa0] sm:$0xff]
      %v308 = vld [vmem:[%s278 + $0xa8] sm:$0xff]
      %v309 = vld [vmem:[%s278 + $0xb0] sm:$0xff]
      %v310 = vld [vmem:[%s278 + $0xb8] sm:$0xff]
      %v311 = vld [vmem:[%s278 + $0xc0] sm:$0xff]
      %v312 = vld [vmem:[%s278 + $0xc8] sm:$0xff]
      %v313 = vld [vmem:[%s278 + $0xd0] sm:$0xff]
      %v314 = vld [vmem:[%s278 + $0xd8] sm:$0xff]
      %v315 = vld [vmem:[%s278 + $0xe0] sm:$0xff]
      %v316 = vld [vmem:[%s278 + $0xe8] sm:$0xff]
      %v317 = vld [vmem:[%s278 + $0xf0] sm:$0xff]
      %v318 = vld [vmem:[%s278 + $0xf8] sm:$0xff]
      %v319 = vld [vmem:[%s278 + $0x100] sm:$0xff]
      %v320 = vld [vmem:[%s278 + $0x108] sm:$0xff]
      %v321 = vld [vmem:[%s278 + $0x110] sm:$0xff]
      %v322 = vld [vmem:[%s278 + $0x118] sm:$0xff]
      %v323 = vld [vmem:[%s278 + $0x120] sm:$0xff]
      %v324 = vld [vmem:[%s278 + $0x128] sm:$0xff]
      %v325 = vld [vmem:[%s278 + $0x130] sm:$0xff]
      %v326 = vld [vmem:[%s278 + $0x138] sm:$0xff]
      %v327 = vld [vmem:[%s278 + $0x140] sm:$0xff]
      %v328 = vld [vmem:[%s278 + $0x148] sm:$0xff]
      %v329 = vld [vmem:[%s278 + $0x150] sm:$0xff]
      %v330 = vld [vmem:[%s278 + $0x158] sm:$0xff]
      %v331 = vld [vmem:[%s278 + $0x160] sm:$0xff]
      %v332 = vld [vmem:[%s278 + $0x168] sm:$0xff]
      %v333 = vld [vmem:[%s278 + $0x170] sm:$0xff]
      %v334 = vld [vmem:[%s278 + $0x178] sm:$0xff]
      %v335 = vld [vmem:[%s278 + $0x180] sm:$0xff]
      %v336 = vld [vmem:[%s278 + $0x188] sm:$0xff]
      %v337 = vld [vmem:[%s278 + $0x190] sm:$0xff]
      %v338 = vld [vmem:[%s278 + $0x198] sm:$0xff]
      %v339 = vld [vmem:[%s278 + $0x1a0] sm:$0xff]
      %v340 = vld [vmem:[%s278 + $0x1a8] sm:$0xff]
      %v341 = vld [vmem:[%s278 + $0x1b0] sm:$0xff]
      %v342 = vld [vmem:[%s278 + $0x1b8] sm:$0xff]
      %v343 = vld [vmem:[%s278 + $0x1c0] sm:$0xff]
      %v344 = vld [vmem:[%s278 + $0x1c8] sm:$0xff]
      %v345 = vld [vmem:[%s278 + $0x1d0] sm:$0xff]
      %v346 = vld [vmem:[%s278 + $0x1d8] sm:$0xff]
      %v347 = vld [vmem:[%s278 + $0x1e0] sm:$0xff]
      %v348 = vld [vmem:[%s278 + $0x1e8] sm:$0xff]
      %v349 = vld [vmem:[%s278 + $0x1f0] sm:$0xff]
      %v350 = vld [vmem:[%s278 + $0x1f8] sm:$0xff]
      %v351 = vld [vmem:[%s1] sm:$0xff]
      %v352 = vld [vmem:[%s1 + $0x8] sm:$0xff]
      %v353 = vld [vmem:[%s1 + $0x10] sm:$0xff]
      %v354 = vld [vmem:[%s1 + $0x18] sm:$0xff]
      %v355 = vld [vmem:[%s1 + $0x20] sm:$0xff]
      %v356 = vld [vmem:[%s1 + $0x28] sm:$0xff]
      %v357 = vld [vmem:[%s1 + $0x30] sm:$0xff]
      %v358 = vld [vmem:[%s1 + $0x38] sm:$0xff]
      %v359 = vld [vmem:[%s1 + $0x40] sm:$0xff]
      %v360 = vld [vmem:[%s1 + $0x48] sm:$0xff]
      %v361 = vld [vmem:[%s1 + $0x50] sm:$0xff]
      %v362 = vld [vmem:[%s1 + $0x58] sm:$0xff]
      %v363 = vld [vmem:[%s1 + $0x60] sm:$0xff]
      %v364 = vld [vmem:[%s1 + $0x68] sm:$0xff]
      %v365 = vld [vmem:[%s1 + $0x70] sm:$0xff]
      %v366 = vld [vmem:[%s1 + $0x78] sm:$0xff]
      %v367 = vld [vmem:[%s1 + $0x80] sm:$0xff]
      %v368 = vld [vmem:[%s1 + $0x88] sm:$0xff]
      %v369 = vld [vmem:[%s1 + $0x90] sm:$0xff]
      %v370 = vld [vmem:[%s1 + $0x98] sm:$0xff]
      %v371 = vld [vmem:[%s1 + $0xa0] sm:$0xff]
      %v372 = vld [vmem:[%s1 + $0xa8] sm:$0xff]
      %v373 = vld [vmem:[%s1 + $0xb0] sm:$0xff]
      %v374 = vld [vmem:[%s1 + $0xb8] sm:$0xff]
      %v375 = vld [vmem:[%s1 + $0xc0] sm:$0xff]
      %v376 = vld [vmem:[%s1 + $0xc8] sm:$0xff]
      %v377 = vld [vmem:[%s1 + $0xd0] sm:$0xff]
      %v378 = vld [vmem:[%s1 + $0xd8] sm:$0xff]
      %v379 = vld [vmem:[%s1 + $0xe0] sm:$0xff]
      %v380 = vld [vmem:[%s1 + $0xe8] sm:$0xff]
      %v381 = vld [vmem:[%s1 + $0xf0] sm:$0xff]
      %v382 = vld [vmem:[%s1 + $0xf8] sm:$0xff]
      %v383 = vld [vmem:[%s1 + $0x100] sm:$0xff]
      %v384 = vld [vmem:[%s1 + $0x108] sm:$0xff]
      %v385 = vld [vmem:[%s1 + $0x110] sm:$0xff]
      %v386 = vld [vmem:[%s1 + $0x118] sm:$0xff]
      %v387 = vld [vmem:[%s1 + $0x120] sm:$0xff]
      %v388 = vld [vmem:[%s1 + $0x128] sm:$0xff]
      %v389 = vld [vmem:[%s1 + $0x130] sm:$0xff]
      %v390 = vld [vmem:[%s1 + $0x138] sm:$0xff]
      %v391 = vld [vmem:[%s1 + $0x140] sm:$0xff]
      %v392 = vld [vmem:[%s1 + $0x148] sm:$0xff]
      %v393 = vld [vmem:[%s1 + $0x150] sm:$0xff]
      %v394 = vld [vmem:[%s1 + $0x158] sm:$0xff]
      %v395 = vld [vmem:[%s1 + $0x160] sm:$0xff]
      %v396 = vld [vmem:[%s1 + $0x168] sm:$0xff]
      %v397 = vld [vmem:[%s1 + $0x170] sm:$0xff]
      %v398 = vld [vmem:[%s1 + $0x178] sm:$0xff]
      %v399 = vld [vmem:[%s1 + $0x180] sm:$0xff]
      %v400 = vld [vmem:[%s1 + $0x188] sm:$0xff]
      %v401 = vld [vmem:[%s2] sm:$0x1]
      %v403 = vlaneseq
      %v404 = vshrl.u32 %v403, 7
      %v405 = vsub.s32 0, %v404
      %v406 = vrot.slane %v401, %v405
      %vm408 = vcmask 130048
      %v410 = vsel %vm408, %v290, 0
      %v413 = vsel %vm408, %v294, 0
      %v416 = vsel %vm408, %v298, 0
      %v419 = vsel %vm408, %v302, 0
      %v422 = vsel %vm408, %v306, 0
      %v425 = vsel %vm408, %v310, 0
      %v428 = vsel %vm408, %v314, 0
      %v431 = vsel %vm408, %v318, 0
      %v434 = vsel %vm408, %v322, 0
      %v437 = vsel %vm408, %v326, 0
      %v440 = vsel %vm408, %v330, 0
      %v443 = vsel %vm408, %v334, 0
      %v446 = vsel %vm408, %v338, 0
      %v449 = vsel %vm408, %v342, 0
      %v452 = vsel %vm408, %v346, 0
      %v455 = vsel %vm408, %v350, 0
      %457 = vmatprep.subr.mxu0 0.0
      %458 = vmatpush1.msra.mxu0 %v351
      %459 = vmatprep.subr.mxu0 0.0
      %460 = vmatpush1.msra.mxu0 %v352
      %461 = vmatprep.subr.mxu0 0.0
      %462 = vmatpush1.msra.mxu0 %v353
      %463 = vmatprep.subr.mxu0 0.0
      %464 = vmatpush1.msra.mxu0 %v354
      %465 = vmatprep.subr.mxu0 0.0
      %466 = vmatpush1.msra.mxu0 %v355
      %467 = vmatprep.subr.mxu0 0.0
      %468 = vmatpush1.msra.mxu0 %v356
      %469 = vmatprep.subr.mxu0 0.0
      %470 = vmatpush1.msra.mxu0 %v357
      %471 = vmatprep.subr.mxu0 0.0
      %472 = vmatpush1.msra.mxu0 %v358
      %473 = vmatprep.subr.mxu0 0.0
      %474 = vmatpush1.msra.mxu0 %v359
      %475 = vmatprep.subr.mxu0 0.0
      %476 = vmatpush1.msra.mxu0 %v360
      %477 = vmatprep.subr.mxu0 0.0
      %478 = vmatpush1.msra.mxu0 %v361
      %479 = vmatprep.subr.mxu0 0.0
      %480 = vmatpush1.msra.mxu0 %v362
      %481 = vmatprep.subr.mxu0 0.0
      %482 = vmatpush1.msra.mxu0 %v363
      %483 = vmatprep.subr.mxu0 0.0
      %484 = vmatpush1.msra.mxu0 %v364
      %485 = vmatprep.subr.mxu0 0.0
      %486 = vmatpush1.msra.mxu0 %v365
      %487 = vmatprep.subr.mxu0 0.0
      %488 = vmatpush1.msra.mxu0 %v366
      %489 = vmatprep.subr.mxu0 0.0
      %490 = vmatpush1.msra.mxu0 %v367
      %491 = vmatprep.subr.mxu0 0.0
      %492 = vmatpush1.msra.mxu0 %v368
      %493 = vmatprep.subr.mxu0 0.0
      %494 = vmatpush1.msra.mxu0 %v369
      %495 = vmatprep.subr.mxu0 0.0
      %496 = vmatpush1.msra.mxu0 %v370
      %497 = vmatprep.subr.mxu0 0.0
      %498 = vmatpush1.msra.mxu0 %v371
      %499 = vmatprep.subr.mxu0 0.0
      %500 = vmatpush1.msra.mxu0 %v372
      %501 = vmatprep.subr.mxu0 0.0
      %502 = vmatpush1.msra.mxu0 %v373
      %503 = vmatprep.subr.mxu0 0.0
      %504 = vmatpush1.msra.mxu0 %v374
      %505 = vmatprep.subr.mxu0 0.0
      %506 = vmatpush1.msra.mxu0 %v375
      %507 = vmatprep.subr.mxu0 0.0
      %508 = vmatpush1.msra.mxu0 %v376
      %509 = vmatprep.subr.mxu0 0.0
      %510 = vmatpush1.msra.mxu0 %v377
      %511 = vmatprep.subr.mxu0 0.0
      %512 = vmatpush1.msra.mxu0 %v378
      %513 = vmatprep.subr.mxu0 0.0
      %514 = vmatpush1.msra.mxu0 %v379
      %515 = vmatprep.subr.mxu0 0.0
      %516 = vmatpush1.msra.mxu0 %v380
      %517 = vmatprep.subr.mxu0 0.0
      %518 = vmatpush1.msra.mxu0 %v381
      %519 = vmatprep.subr.mxu0 0.0
      %520 = vmatpush1.msra.mxu0 %v382
      %521 = vmatprep.mubr.f32.mxu0 %v288
      %522 = vmatmul.mubr.f32.gmra.mrb[0].mxu0 %v287
      %v523 = vpop.f32.mrb[0].mxu0
      %v524 = vadd.f32 %v406, %v523
      %v525 = vpop.f32.mrb[0].mxu0
      %526 = vmatprep.mubr.f32.mxu0 %v292
      %527 = vmatmul.mubr.f32.gmra.mrb[0].mxu0 %v291
      %v528 = vpop.f32.mrb[0].mxu0
      %v529 = vadd.f32 %v406, %v528
      %v530 = vpop.f32.mrb[0].mxu0
      %531 = vmatprep.mubr.f32.mxu0 %v296
      %532 = vmatmul.mubr.f32.gmra.mrb[0].mxu0 %v295
      %v533 = vpop.f32.mrb[0].mxu0
      %v534 = vadd.f32 %v406, %v533
      %v535 = vpop.f32.mrb[0].mxu0
      %536 = vmatprep.mubr.f32.mxu0 %v300
      %537 = vmatmul.mubr.f32.gmra.mrb[0].mxu0 %v299
      %v538 = vpop.f32.mrb[0].mxu0
      %v539 = vadd.f32 %v406, %v538
      %v540 = vpop.f32.mrb[0].mxu0
      %541 = vmatprep.mubr.f32.mxu0 %v304
      %542 = vmatmul.mubr.f32.gmra.mrb[0].mxu0 %v303
      %v543 = vpop.f32.mrb[0].mxu0
      %v544 = vadd.f32 %v406, %v543
      %v545 = vpop.f32.mrb[0].mxu0
      %546 = vmatprep.mubr.f32.mxu0 %v308
      %547 = vmatmul.mubr.f32.gmra.mrb[0].mxu0 %v307
      %v548 = vpop.f32.mrb[0].mxu0
      %v549 = vadd.f32 %v406, %v548
      %v550 = vpop.f32.mrb[0].mxu0
      %551 = vmatprep.mubr.f32.mxu0 %v312
      %552 = vmatmul.mubr.f32.gmra.mrb[0].mxu0 %v311
      %v553 = vpop.f32.mrb[0].mxu0
      %v554 = vadd.f32 %v406, %v553
      %v555 = vpop.f32.mrb[0].mxu0
      %556 = vmatprep.mubr.f32.mxu0 %v316
      %557 = vmatmul.mubr.f32.gmra.mrb[0].mxu0 %v315
      %v558 = vpop.f32.mrb[0].mxu0
      %v559 = vadd.f32 %v406, %v558
      %v560 = vpop.f32.mrb[0].mxu0
      %561 = vmatprep.mubr.f32.mxu0 %v320
      %562 = vmatmul.mubr.f32.gmra.mrb[0].mxu0 %v319
      %v563 = vpop.f32.mrb[0].mxu0
      %v564 = vadd.f32 %v406, %v563
      %v565 = vpop.f32.mrb[0].mxu0
      %566 = vmatprep.mubr.f32.mxu0 %v324
      %567 = vmatmul.mubr.f32.gmra.mrb[0].mxu0 %v323
      %v568 = vpop.f32.mrb[0].mxu0
      %v569 = vadd.f32 %v406, %v568
      %v570 = vpop.f32.mrb[0].mxu0
      %571 = vmatprep.mubr.f32.mxu0 %v328
      %572 = vmatmul.mubr.f32.gmra.mrb[0].mxu0 %v327
      %v573 = vpop.f32.mrb[0].mxu0
      %v574 = vadd.f32 %v406, %v573
      %v575 = vpop.f32.mrb[0].mxu0
      %576 = vmatprep.mubr.f32.mxu0 %v332
      %577 = vmatmul.mubr.f32.gmra.mrb[0].mxu0 %v331
      %v578 = vpop.f32.mrb[0].mxu0
      %v579 = vadd.f32 %v406, %v578
      %v580 = vpop.f32.mrb[0].mxu0
      %581 = vmatprep.mubr.f32.mxu0 %v336
      %582 = vmatmul.mubr.f32.gmra.mrb[0].mxu0 %v335
      %v583 = vpop.f32.mrb[0].mxu0
      %v584 = vadd.f32 %v406, %v583
      %v585 = vpop.f32.mrb[0].mxu0
      %586 = vmatprep.mubr.f32.mxu0 %v340
      %587 = vmatmul.mubr.f32.gmra.mrb[0].mxu0 %v339
      %v588 = vpop.f32.mrb[0].mxu0
      %v589 = vadd.f32 %v406, %v588
      %v590 = vpop.f32.mrb[0].mxu0
      %591 = vmatprep.mubr.f32.mxu0 %v344
      %592 = vmatmul.mubr.f32.gmra.mrb[0].mxu0 %v343
      %v593 = vpop.f32.mrb[0].mxu0
      %v594 = vadd.f32 %v406, %v593
      %v595 = vpop.f32.mrb[0].mxu0
      %596 = vmatprep.mubr.f32.mxu0 %v348
      %597 = vmatmul.mubr.f32.gmra.mrb[0].mxu0 %v347
      %v598 = vpop.f32.mrb[0].mxu0
      %v599 = vadd.f32 %v406, %v598
      %v600 = vpop.f32.mrb[0].mxu0
      %601 = vdwg.mxu0
      %602 = vmatprep.subr.mxu0 0.0
      %603 = vmatpush1.msra.mxu0 %v383
      %604 = vmatprep.subr.mxu0 0.0
      %605 = vmatpush1.msra.mxu0 %v384
      %606 = vmatprep.subr.mxu0 0.0
      %607 = vmatpush1.msra.mxu0 %v385
      %608 = vmatprep.subr.mxu0 0.0
      %609 = vmatpush1.msra.mxu0 %v386
      %610 = vmatprep.subr.mxu0 0.0
      %611 = vmatpush1.msra.mxu0 %v387
      %612 = vmatprep.subr.mxu0 0.0
      %613 = vmatpush1.msra.mxu0 %v388
      %614 = vmatprep.subr.mxu0 0.0
      %615 = vmatpush1.msra.mxu0 %v389
      %616 = vmatprep.subr.mxu0 0.0
      %617 = vmatpush1.msra.mxu0 %v390
      %618 = vmatprep.subr.mxu0 0.0
      %619 = vmatpush1.msra.mxu0 %v391
      %620 = vmatprep.subr.mxu0 0.0
      %621 = vmatpush1.msra.mxu0 %v392
      %622 = vmatprep.subr.mxu0 0.0
      %623 = vmatpush1.msra.mxu0 %v393
      %624 = vmatprep.subr.mxu0 0.0
      %625 = vmatpush1.msra.mxu0 %v394
      %626 = vmatprep.subr.mxu0 0.0
      %627 = vmatpush1.msra.mxu0 %v395
      %628 = vmatprep.subr.mxu0 0.0
      %629 = vmatpush1.msra.mxu0 %v396
      %630 = vmatprep.subr.mxu0 0.0
      %631 = vmatpush1.msra.mxu0 %v397
      %632 = vmatprep.subr.mxu0 0.0
      %633 = vmatpush1.msra.mxu0 %v398
      %634 = vmatprep.subr.mxu0 0.0
      %635 = vmatpush1.msra.mxu0 %v399
      %636 = vmatprep.subr.mxu0 0.0
      %637 = vmatpush1.msra.mxu0 %v400
      %638 = vmatprep.subr.mxu0 0.0
      %639 = vmatpush1.msra.mxu0 0.0
      %640 = vmatprep.subr.mxu0 0.0
      %641 = vmatpush1.msra.mxu0 0.0
      %642 = vmatprep.subr.mxu0 0.0
      %643 = vmatpush1.msra.mxu0 0.0
      %644 = vmatprep.subr.mxu0 0.0
      %645 = vmatpush1.msra.mxu0 0.0
      %646 = vmatprep.subr.mxu0 0.0
      %647 = vmatpush1.msra.mxu0 0.0
      %648 = vmatprep.subr.mxu0 0.0
      %649 = vmatpush1.msra.mxu0 0.0
      %650 = vmatprep.subr.mxu0 0.0
      %651 = vmatpush1.msra.mxu0 0.0
      %652 = vmatprep.subr.mxu0 0.0
      %653 = vmatpush1.msra.mxu0 0.0
      %654 = vmatprep.subr.mxu0 0.0
      %655 = vmatpush1.msra.mxu0 0.0
      %656 = vmatprep.subr.mxu0 0.0
      %657 = vmatpush1.msra.mxu0 0.0
      %658 = vmatprep.subr.mxu0 0.0
      %659 = vmatpush1.msra.mxu0 0.0
      %660 = vmatprep.subr.mxu0 0.0
      %661 = vmatpush1.msra.mxu0 0.0
      %662 = vmatprep.subr.mxu0 0.0
      %663 = vmatpush1.msra.mxu0 0.0
      %664 = vmatprep.subr.mxu0 0.0
      %665 = vmatpush1.msra.mxu0 0.0
      %666 = vmatprep.mubr.f32.mxu0 %v410
      %667 = vmatmul.mubr.f32.gmra.mrb[0].mxu0 %v289
      %v668 = vpop.f32.mrb[0].mxu0
      %v669 = vadd.f32 %v524, %v668
      %v670 = vpop.f32.mrb[0].mxu0
      %671 = vmatprep.mubr.f32.mxu0 %v413
      %672 = vmatmul.mubr.f32.gmra.mrb[0].mxu0 %v293
      %v673 = vpop.f32.mrb[0].mxu0
      %v674 = vadd.f32 %v529, %v673
      %v675 = vpop.f32.mrb[0].mxu0
      %676 = vmatprep.mubr.f32.mxu0 %v416
      %677 = vmatmul.mubr.f32.gmra.mrb[0].mxu0 %v297
      %v678 = vpop.f32.mrb[0].mxu0
      %v679 = vadd.f32 %v534, %v678
      %v680 = vpop.f32.mrb[0].mxu0
      %681 = vmatprep.mubr.f32.mxu0 %v419
      %682 = vmatmul.mubr.f32.gmra.mrb[0].mxu0 %v301
      %v683 = vpop.f32.mrb[0].mxu0
      %v684 = vadd.f32 %v539, %v683
      %v685 = vpop.f32.mrb[0].mxu0
      %686 = vmatprep.mubr.f32.mxu0 %v422
      %687 = vmatmul.mubr.f32.gmra.mrb[0].mxu0 %v305
      %v688 = vpop.f32.mrb[0].mxu0
      %v689 = vadd.f32 %v544, %v688
      %v690 = vpop.f32.mrb[0].mxu0
      %691 = vmatprep.mubr.f32.mxu0 %v425
      %692 = vmatmul.mubr.f32.gmra.mrb[0].mxu0 %v309
      %v693 = vpop.f32.mrb[0].mxu0
      %v694 = vadd.f32 %v549, %v693
      %v695 = vpop.f32.mrb[0].mxu0
      %696 = vmatprep.mubr.f32.mxu0 %v428
      %697 = vmatmul.mubr.f32.gmra.mrb[0].mxu0 %v313
      %v698 = vpop.f32.mrb[0].mxu0
      %v699 = vadd.f32 %v554, %v698
      %v700 = vpop.f32.mrb[0].mxu0
      %701 = vmatprep.mubr.f32.mxu0 %v431
      %702 = vmatmul.mubr.f32.gmra.mrb[0].mxu0 %v317
      %v703 = vpop.f32.mrb[0].mxu0
      %v704 = vadd.f32 %v559, %v703
      %v705 = vpop.f32.mrb[0].mxu0
      %706 = vmatprep.mubr.f32.mxu0 %v434
      %707 = vmatmul.mubr.f32.gmra.mrb[0].mxu0 %v321
      %v708 = vpop.f32.mrb[0].mxu0
      %v709 = vadd.f32 %v564, %v708
      %v710 = vpop.f32.mrb[0].mxu0
      %711 = vmatprep.mubr.f32.mxu0 %v437
      %712 = vmatmul.mubr.f32.gmra.mrb[0].mxu0 %v325
      %v713 = vpop.f32.mrb[0].mxu0
      %v714 = vadd.f32 %v569, %v713
      %v715 = vpop.f32.mrb[0].mxu0
      %716 = vmatprep.mubr.f32.mxu0 %v440
      %717 = vmatmul.mubr.f32.gmra.mrb[0].mxu0 %v329
      %v718 = vpop.f32.mrb[0].mxu0
      %v719 = vadd.f32 %v574, %v718
      %v720 = vpop.f32.mrb[0].mxu0
      %721 = vmatprep.mubr.f32.mxu0 %v443
      %722 = vmatmul.mubr.f32.gmra.mrb[0].mxu0 %v333
      %v723 = vpop.f32.mrb[0].mxu0
      %v724 = vadd.f32 %v579, %v723
      %v725 = vpop.f32.mrb[0].mxu0
      %726 = vmatprep.mubr.f32.mxu0 %v446
      %727 = vmatmul.mubr.f32.gmra.mrb[0].mxu0 %v337
      %v728 = vpop.f32.mrb[0].mxu0
      %v729 = vadd.f32 %v584, %v728
      %v730 = vpop.f32.mrb[0].mxu0
      %731 = vmatprep.mubr.f32.mxu0 %v449
      %732 = vmatmul.mubr.f32.gmra.mrb[0].mxu0 %v341
      %v733 = vpop.f32.mrb[0].mxu0
      %v734 = vadd.f32 %v589, %v733
      %v735 = vpop.f32.mrb[0].mxu0
      %736 = vmatprep.mubr.f32.mxu0 %v452
      %737 = vmatmul.mubr.f32.gmra.mrb[0].mxu0 %v345
      %v738 = vpop.f32.mrb[0].mxu0
      %v739 = vadd.f32 %v594, %v738
      %v740 = vpop.f32.mrb[0].mxu0
      %741 = vmatprep.mubr.f32.mxu0 %v455
      %742 = vmatmul.mubr.f32.gmra.mrb[0].mxu0 %v349
      %v743 = vpop.f32.mrb[0].mxu0
      %v744 = vadd.f32 %v599, %v743
      %v745 = vpop.f32.mrb[0].mxu0
      %746 = vdwg.mxu0
      %v747 = vtanh.pop %v669
      %v748 = vtanh.pop %v674
      %v749 = vtanh.pop %v679
      %v750 = vtanh.pop %v684
      %v751 = vtanh.pop %v689
      %v752 = vtanh.pop %v694
      %v753 = vtanh.pop %v699
      %v754 = vtanh.pop %v704
      %v755 = vtanh.pop %v709
      %v756 = vtanh.pop %v714
      %v757 = vtanh.pop %v719
      %v758 = vtanh.pop %v724
      %v759 = vtanh.pop %v729
      %v760 = vtanh.pop %v734
      %v761 = vtanh.pop %v739
      %v762 = vtanh.pop %v744
      %v763 = vld [vmem:[%s3] sm:$0xff]
      %v764 = vld [vmem:[%s3 + $0x8] sm:$0x3]
      %v765 = vld [vmem:[%s4] sm:$0x1]
      %v767 = vlaneseq
      %v768 = vshrl.u32 %v767, 7
      %v769 = vsub.s32 0, %v768
      %v770 = vrot.slane %v765, %v769
      %vm772 = vcmask 80896
      %v774 = vsel %vm772, %v747, 0
      %v777 = vsel %vm772, %v748, 0
      %v780 = vsel %vm772, %v749, 0
      %v783 = vsel %vm772, %v750, 0
      %v786 = vsel %vm772, %v751, 0
      %v789 = vsel %vm772, %v752, 0
      %v792 = vsel %vm772, %v753, 0
      %v795 = vsel %vm772, %v754, 0
      %v798 = vsel %vm772, %v755, 0
      %v801 = vsel %vm772, %v756, 0
      %v804 = vsel %vm772, %v757, 0
      %v807 = vsel %vm772, %v758, 0
      %v810 = vsel %vm772, %v759, 0
      %v813 = vsel %vm772, %v760, 0
      %v816 = vsel %vm772, %v761, 0
      %v819 = vsel %vm772, %v762, 0
      %vm821 = vcmask 1041408
      %v823 = vsel %vm821, %v764, 0
      %825 = vmatprep.subr.mxu0 0.0
      %826 = vmatpush1.msra.mxu0 %v763
      %827 = vmatprep.subr.mxu0 0.0
      %828 = vmatpush1.msra.mxu0 %v823
      %829 = vmatprep.subr.mxu0 0.0
      %830 = vmatpush1.msra.mxu0 0.0
      %831 = vmatprep.subr.mxu0 0.0
      %832 = vmatpush1.msra.mxu0 0.0
      %833 = vmatprep.subr.mxu0 0.0
      %834 = vmatpush1.msra.mxu0 0.0
      %835 = vmatprep.subr.mxu0 0.0
      %836 = vmatpush1.msra.mxu0 0.0
      %837 = vmatprep.subr.mxu0 0.0
      %838 = vmatpush1.msra.mxu0 0.0
      %839 = vmatprep.subr.mxu0 0.0
      %840 = vmatpush1.msra.mxu0 0.0
      %841 = vmatprep.subr.mxu0 0.0
      %842 = vmatpush1.msra.mxu0 0.0
      %843 = vmatprep.subr.mxu0 0.0
      %844 = vmatpush1.msra.mxu0 0.0
      %845 = vmatprep.subr.mxu0 0.0
      %846 = vmatpush1.msra.mxu0 0.0
      %847 = vmatprep.subr.mxu0 0.0
      %848 = vmatpush1.msra.mxu0 0.0
      %849 = vmatprep.subr.mxu0 0.0
      %850 = vmatpush1.msra.mxu0 0.0
      %851 = vmatprep.subr.mxu0 0.0
      %852 = vmatpush1.msra.mxu0 0.0
      %853 = vmatprep.subr.mxu0 0.0
      %854 = vmatpush1.msra.mxu0 0.0
      %855 = vmatprep.subr.mxu0 0.0
      %856 = vmatpush1.msra.mxu0 0.0
      %857 = vmatprep.subr.mxu0 0.0
      %858 = vmatpush1.msra.mxu0 0.0
      %859 = vmatprep.subr.mxu0 0.0
      %860 = vmatpush1.msra.mxu0 0.0
      %861 = vmatprep.subr.mxu0 0.0
      %862 = vmatpush1.msra.mxu0 0.0
      %863 = vmatprep.subr.mxu0 0.0
      %864 = vmatpush1.msra.mxu0 0.0
      %865 = vmatprep.subr.mxu0 0.0
      %866 = vmatpush1.msra.mxu0 0.0
      %867 = vmatprep.subr.mxu0 0.0
      %868 = vmatpush1.msra.mxu0 0.0
      %869 = vmatprep.subr.mxu0 0.0
      %870 = vmatpush1.msra.mxu0 0.0
      %871 = vmatprep.subr.mxu0 0.0
      %872 = vmatpush1.msra.mxu0 0.0
      %873 = vmatprep.subr.mxu0 0.0
      %874 = vmatpush1.msra.mxu0 0.0
      %875 = vmatprep.subr.mxu0 0.0
      %876 = vmatpush1.msra.mxu0 0.0
      %877 = vmatprep.subr.mxu0 0.0
      %878 = vmatpush1.msra.mxu0 0.0
      %879 = vmatprep.subr.mxu0 0.0
      %880 = vmatpush1.msra.mxu0 0.0
      %881 = vmatprep.subr.mxu0 0.0
      %882 = vmatpush1.msra.mxu0 0.0
      %883 = vmatprep.subr.mxu0 0.0
      %884 = vmatpush1.msra.mxu0 0.0
      %885 = vmatprep.subr.mxu0 0.0
      %886 = vmatpush1.msra.mxu0 0.0
      %887 = vmatprep.subr.mxu0 0.0
      %888 = vmatpush1.msra.mxu0 0.0
      %889 = vmatprep.mubr.f32.mxu0 0.0
      %890 = vmatmul.mubr.f32.gmra.mrb[0].mxu0 %v774
      %v891 = vpop.f32.mrb[0].mxu0
      %v892 = vadd.f32 %v770, %v891
      %v893 = vpop.f32.mrb[0].mxu0
      %894 = vmatprep.mubr.f32.mxu0 0.0
      %895 = vmatmul.mubr.f32.gmra.mrb[0].mxu0 %v777
      %v896 = vpop.f32.mrb[0].mxu0
      %v897 = vadd.f32 %v770, %v896
      %v898 = vpop.f32.mrb[0].mxu0
      %899 = vmatprep.mubr.f32.mxu0 0.0
      %900 = vmatmul.mubr.f32.gmra.mrb[0].mxu0 %v780
      %v901 = vpop.f32.mrb[0].mxu0
      %v902 = vadd.f32 %v770, %v901
      %v903 = vpop.f32.mrb[0].mxu0
      %904 = vmatprep.mubr.f32.mxu0 0.0
      %905 = vmatmul.mubr.f32.gmra.mrb[0].mxu0 %v783
      %v906 = vpop.f32.mrb[0].mxu0
      %v907 = vadd.f32 %v770, %v906
      %v908 = vpop.f32.mrb[0].mxu0
      %909 = vmatprep.mubr.f32.mxu0 0.0
      %910 = vmatmul.mubr.f32.gmra.mrb[0].mxu0 %v786
      %v911 = vpop.f32.mrb[0].mxu0
      %v912 = vadd.f32 %v770, %v911
      %v913 = vpop.f32.mrb[0].mxu0
      %914 = vmatprep.mubr.f32.mxu0 0.0
      %915 = vmatmul.mubr.f32.gmra.mrb[0].mxu0 %v789
      %v916 = vpop.f32.mrb[0].mxu0
      %v917 = vadd.f32 %v770, %v916
      %v918 = vpop.f32.mrb[0].mxu0
      %919 = vmatprep.mubr.f32.mxu0 0.0
      %920 = vmatmul.mubr.f32.gmra.mrb[0].mxu0 %v792
      %v921 = vpop.f32.mrb[0].mxu0
      %v922 = vadd.f32 %v770, %v921
      %v923 = vpop.f32.mrb[0].mxu0
      %924 = vmatprep.mubr.f32.mxu0 0.0
      %925 = vmatmul.mubr.f32.gmra.mrb[0].mxu0 %v795
      %v926 = vpop.f32.mrb[0].mxu0
      %v927 = vadd.f32 %v770, %v926
      %v928 = vpop.f32.mrb[0].mxu0
      %929 = vmatprep.mubr.f32.mxu0 0.0
      %930 = vmatmul.mubr.f32.gmra.mrb[0].mxu0 %v798
      %v931 = vpop.f32.mrb[0].mxu0
      %v932 = vadd.f32 %v770, %v931
      %v933 = vpop.f32.mrb[0].mxu0
      %934 = vmatprep.mubr.f32.mxu0 0.0
      %935 = vmatmul.mubr.f32.gmra.mrb[0].mxu0 %v801
      %v936 = vpop.f32.mrb[0].mxu0
      %v937 = vadd.f32 %v770, %v936
      %v938 = vpop.f32.mrb[0].mxu0
      %939 = vmatprep.mubr.f32.mxu0 0.0
      %940 = vmatmul.mubr.f32.gmra.mrb[0].mxu0 %v804
      %v941 = vpop.f32.mrb[0].mxu0
      %v942 = vadd.f32 %v770, %v941
      %v943 = vpop.f32.mrb[0].mxu0
      %944 = vmatprep.mubr.f32.mxu0 0.0
      %945 = vmatmul.mubr.f32.gmra.mrb[0].mxu0 %v807
      %v946 = vpop.f32.mrb[0].mxu0
      %v947 = vadd.f32 %v770, %v946
      %v948 = vpop.f32.mrb[0].mxu0
      %949 = vmatprep.mubr.f32.mxu0 0.0
      %950 = vmatmul.mubr.f32.gmra.mrb[0].mxu0 %v810
      %v951 = vpop.f32.mrb[0].mxu0
      %v952 = vadd.f32 %v770, %v951
      %v953 = vpop.f32.mrb[0].mxu0
      %954 = vmatprep.mubr.f32.mxu0 0.0
      %955 = vmatmul.mubr.f32.gmra.mrb[0].mxu0 %v813
      %v956 = vpop.f32.mrb[0].mxu0
      %v957 = vadd.f32 %v770, %v956
      %v958 = vpop.f32.mrb[0].mxu0
      %959 = vmatprep.mubr.f32.mxu0 0.0
      %960 = vmatmul.mubr.f32.gmra.mrb[0].mxu0 %v816
      %v961 = vpop.f32.mrb[0].mxu0
      %v962 = vadd.f32 %v770, %v961
      %v963 = vpop.f32.mrb[0].mxu0
      %964 = vmatprep.mubr.f32.mxu0 0.0
      %965 = vmatmul.mubr.f32.gmra.mrb[0].mxu0 %v819
      %v966 = vpop.f32.mrb[0].mxu0
      %v967 = vadd.f32 %v770, %v966
      %v968 = vpop.f32.mrb[0].mxu0
      %969 = vdwg.mxu0
      %v970 = vtanh.pop %v892
      %v971 = vtanh.pop %v897
      %v972 = vtanh.pop %v902
      %v973 = vtanh.pop %v907
      %v974 = vtanh.pop %v912
      %v975 = vtanh.pop %v917
      %v976 = vtanh.pop %v922
      %v977 = vtanh.pop %v927
      %v978 = vtanh.pop %v932
      %v979 = vtanh.pop %v937
      %v980 = vtanh.pop %v942
      %v981 = vtanh.pop %v947
      %v982 = vtanh.pop %v952
      %v983 = vtanh.pop %v957
      %v984 = vtanh.pop %v962
      %v985 = vtanh.pop %v967
      %v986 = vld [vmem:[%s5] sm:$0x1f]
      %v987 = vld [vmem:[%s5 + $0x8] sm:$0x1f]
      %v988 = vld [vmem:[%s5 + $0x10] sm:$0x1f]
      %v989 = vld [vmem:[%s5 + $0x18] sm:$0x1f]
      %v990 = vld [vmem:[%s6] sm:$0xf]
      %v992 = vlaneseq
      %v993 = vshrl.u32 %v992, 7
      %v994 = vsub.s32 0, %v993
      %v995 = vrot.slane %v990, %v994
      %v996 = vlaneseq
      %v997 = vshrl.u32 %v996, 7
      %v998 = vsub.s32 1, %v997
      %v999 = vrot.slane %v990, %v998
      %v1000 = vlaneseq
      %v1001 = vshrl.u32 %v1000, 7
      %v1002 = vsub.s32 2, %v1001
      %v1003 = vrot.slane %v990, %v1002
      %v1004 = vlaneseq
      %v1005 = vshrl.u32 %v1004, 7
      %v1006 = vsub.s32 3, %v1005
      %v1007 = vrot.slane %v990, %v1006
      %vm1012 = vcmask 39936
      %v1014 = vsel %vm1012, %v970, 0
      %v1017 = vsel %vm1012, %v971, 0
      %v1020 = vsel %vm1012, %v972, 0
      %v1023 = vsel %vm1012, %v973, 0
      %v1026 = vsel %vm1012, %v974, 0
      %v1029 = vsel %vm1012, %v975, 0
      %v1032 = vsel %vm1012, %v976, 0
      %v1035 = vsel %vm1012, %v977, 0
      %v1038 = vsel %vm1012, %v978, 0
      %v1041 = vsel %vm1012, %v979, 0
      %v1044 = vsel %vm1012, %v980, 0
      %v1047 = vsel %vm1012, %v981, 0
      %v1050 = vsel %vm1012, %v982, 0
      %v1053 = vsel %vm1012, %v983, 0
      %v1056 = vsel %vm1012, %v984, 0
      %v1059 = vsel %vm1012, %v985, 0
      %vm1061 = vcmask 1044480
      %v1063 = vsel %vm1061, %v986, 0
      %v1066 = vsel %vm1061, %v987, 0
      %v1069 = vsel %vm1061, %v988, 0
      %v1072 = vsel %vm1061, %v989, 0
      %1074 = vmatprep.subr.mxu0 %v1066
      %1075 = vmatpush1.msra.mxu0 %v1063
      %1076 = vmatprep.subr.mxu0 0.0
      %1077 = vmatpush1.msra.mxu0 0.0
      %1078 = vmatprep.subr.mxu0 0.0
      %1079 = vmatpush1.msra.mxu0 0.0
      %1080 = vmatprep.subr.mxu0 0.0
      %1081 = vmatpush1.msra.mxu0 0.0
      %1082 = vmatprep.subr.mxu0 0.0
      %1083 = vmatpush1.msra.mxu0 0.0
      %1084 = vmatprep.subr.mxu0 0.0
      %1085 = vmatpush1.msra.mxu0 0.0
      %1086 = vmatprep.subr.mxu0 0.0
      %1087 = vmatpush1.msra.mxu0 0.0
      %1088 = vmatprep.subr.mxu0 0.0
      %1089 = vmatpush1.msra.mxu0 0.0
      %1090 = vmatprep.subr.mxu0 0.0
      %1091 = vmatpush1.msra.mxu0 0.0
      %1092 = vmatprep.subr.mxu0 0.0
      %1093 = vmatpush1.msra.mxu0 0.0
      %1094 = vmatprep.subr.mxu0 0.0
      %1095 = vmatpush1.msra.mxu0 0.0
      %1096 = vmatprep.subr.mxu0 0.0
      %1097 = vmatpush1.msra.mxu0 0.0
      %1098 = vmatprep.subr.mxu0 0.0
      %1099 = vmatpush1.msra.mxu0 0.0
      %1100 = vmatprep.subr.mxu0 0.0
      %1101 = vmatpush1.msra.mxu0 0.0
      %1102 = vmatprep.subr.mxu0 0.0
      %1103 = vmatpush1.msra.mxu0 0.0
      %1104 = vmatprep.subr.mxu0 0.0
      %1105 = vmatpush1.msra.mxu0 0.0
      %1106 = vmatprep.subr.mxu0 0.0
      %1107 = vmatpush1.msra.mxu0 0.0
      %1108 = vmatprep.subr.mxu0 0.0
      %1109 = vmatpush1.msra.mxu0 0.0
      %1110 = vmatprep.subr.mxu0 0.0
      %1111 = vmatpush1.msra.mxu0 0.0
      %1112 = vmatprep.subr.mxu0 0.0
      %1113 = vmatpush1.msra.mxu0 0.0
      %1114 = vmatprep.subr.mxu0 0.0
      %1115 = vmatpush1.msra.mxu0 0.0
      %1116 = vmatprep.subr.mxu0 0.0
      %1117 = vmatpush1.msra.mxu0 0.0
      %1118 = vmatprep.subr.mxu0 0.0
      %1119 = vmatpush1.msra.mxu0 0.0
      %1120 = vmatprep.subr.mxu0 0.0
      %1121 = vmatpush1.msra.mxu0 0.0
      %1122 = vmatprep.subr.mxu0 0.0
      %1123 = vmatpush1.msra.mxu0 0.0
      %1124 = vmatprep.subr.mxu0 0.0
      %1125 = vmatpush1.msra.mxu0 0.0
      %1126 = vmatprep.subr.mxu0 0.0
      %1127 = vmatpush1.msra.mxu0 0.0
      %1128 = vmatprep.subr.mxu0 0.0
      %1129 = vmatpush1.msra.mxu0 0.0
      %1130 = vmatprep.subr.mxu0 0.0
      %1131 = vmatpush1.msra.mxu0 0.0
      %1132 = vmatprep.subr.mxu0 0.0
      %1133 = vmatpush1.msra.mxu0 0.0
      %1134 = vmatprep.subr.mxu0 0.0
      %1135 = vmatpush1.msra.mxu0 0.0
      %1136 = vmatprep.subr.mxu0 0.0
      %1137 = vmatpush1.msra.mxu0 0.0
      %1138 = vmatprep.mubr.f32.mxu0 0.0
      %1139 = vmatmul.mubr.f32.gmra.mrb[0].mxu0 %v1014
      %v1140 = vpop.f32.mrb[0].mxu0
      %v1141 = vadd.f32 %v995, %v1140
      %v1142 = vpop.f32.mrb[0].mxu0
      %v1143 = vadd.f32 %v999, %v1142
      %1144 = vmatprep.mubr.f32.mxu0 0.0
      %1145 = vmatmul.mubr.f32.gmra.mrb[0].mxu0 %v1017
      %v1146 = vpop.f32.mrb[0].mxu0
      %v1147 = vadd.f32 %v995, %v1146
      %v1148 = vpop.f32.mrb[0].mxu0
      %v1149 = vadd.f32 %v999, %v1148
      %1150 = vmatprep.mubr.f32.mxu0 0.0
      %1151 = vmatmul.mubr.f32.gmra.mrb[0].mxu0 %v1020
      %v1152 = vpop.f32.mrb[0].mxu0
      %v1153 = vadd.f32 %v995, %v1152
      %v1154 = vpop.f32.mrb[0].mxu0
      %v1155 = vadd.f32 %v999, %v1154
      %1156 = vmatprep.mubr.f32.mxu0 0.0
      %1157 = vmatmul.mubr.f32.gmra.mrb[0].mxu0 %v1023
      %v1158 = vpop.f32.mrb[0].mxu0
      %v1159 = vadd.f32 %v995, %v1158
      %v1160 = vpop.f32.mrb[0].mxu0
      %v1161 = vadd.f32 %v999, %v1160
      %1162 = vmatprep.mubr.f32.mxu0 0.0
      %1163 = vmatmul.mubr.f32.gmra.mrb[0].mxu0 %v1026
      %v1164 = vpop.f32.mrb[0].mxu0
      %v1165 = vadd.f32 %v995, %v1164
      %v1166 = vpop.f32.mrb[0].mxu0
      %v1167 = vadd.f32 %v999, %v1166
      %1168 = vmatprep.mubr.f32.mxu0 0.0
      %1169 = vmatmul.mubr.f32.gmra.mrb[0].mxu0 %v1029
      %v1170 = vpop.f32.mrb[0].mxu0
      %v1171 = vadd.f32 %v995, %v1170
      %v1172 = vpop.f32.mrb[0].mxu0
      %v1173 = vadd.f32 %v999, %v1172
      %1174 = vmatprep.mubr.f32.mxu0 0.0
      %1175 = vmatmul.mubr.f32.gmra.mrb[0].mxu0 %v1032
      %v1176 = vpop.f32.mrb[0].mxu0
      %v1177 = vadd.f32 %v995, %v1176
      %v1178 = vpop.f32.mrb[0].mxu0
      %v1179 = vadd.f32 %v999, %v1178
      %1180 = vmatprep.mubr.f32.mxu0 0.0
      %1181 = vmatmul.mubr.f32.gmra.mrb[0].mxu0 %v1035
      %v1182 = vpop.f32.mrb[0].mxu0
      %v1183 = vadd.f32 %v995, %v1182
      %v1184 = vpop.f32.mrb[0].mxu0
      %v1185 = vadd.f32 %v999, %v1184
      %1186 = vmatprep.mubr.f32.mxu0 0.0
      %1187 = vmatmul.mubr.f32.gmra.mrb[0].mxu0 %v1038
      %v1188 = vpop.f32.mrb[0].mxu0
      %v1189 = vadd.f32 %v995, %v1188
      %v1190 = vpop.f32.mrb[0].mxu0
      %v1191 = vadd.f32 %v999, %v1190
      %1192 = vmatprep.mubr.f32.mxu0 0.0
      %1193 = vmatmul.mubr.f32.gmra.mrb[0].mxu0 %v1041
      %v1194 = vpop.f32.mrb[0].mxu0
      %v1195 = vadd.f32 %v995, %v1194
      %v1196 = vpop.f32.mrb[0].mxu0
      %v1197 = vadd.f32 %v999, %v1196
      %1198 = vmatprep.mubr.f32.mxu0 0.0
      %1199 = vmatmul.mubr.f32.gmra.mrb[0].mxu0 %v1044
      %v1200 = vpop.f32.mrb[0].mxu0
      %v1201 = vadd.f32 %v995, %v1200
      %v1202 = vpop.f32.mrb[0].mxu0
      %v1203 = vadd.f32 %v999, %v1202
      %1204 = vmatprep.mubr.f32.mxu0 0.0
      %1205 = vmatmul.mubr.f32.gmra.mrb[0].mxu0 %v1047
      %v1206 = vpop.f32.mrb[0].mxu0
      %v1207 = vadd.f32 %v995, %v1206
      %v1208 = vpop.f32.mrb[0].mxu0
      %v1209 = vadd.f32 %v999, %v1208
      %1210 = vmatprep.mubr.f32.mxu0 0.0
      %1211 = vmatmul.mubr.f32.gmra.mrb[0].mxu0 %v1050
      %v1212 = vpop.f32.mrb[0].mxu0
      %v1213 = vadd.f32 %v995, %v1212
      %v1214 = vpop.f32.mrb[0].mxu0
      %v1215 = vadd.f32 %v999, %v1214
      %1216 = vmatprep.mubr.f32.mxu0 0.0
      %1217 = vmatmul.mubr.f32.gmra.mrb[0].mxu0 %v1053
      %v1218 = vpop.f32.mrb[0].mxu0
      %v1219 = vadd.f32 %v995, %v1218
      %v1220 = vpop.f32.mrb[0].mxu0
      %v1221 = vadd.f32 %v999, %v1220
      %1222 = vmatprep.mubr.f32.mxu0 0.0
      %1223 = vmatmul.mubr.f32.gmra.mrb[0].mxu0 %v1056
      %v1224 = vpop.f32.mrb[0].mxu0
      %v1225 = vadd.f32 %v995, %v1224
      %v1226 = vpop.f32.mrb[0].mxu0
      %v1227 = vadd.f32 %v999, %v1226
      %1228 = vmatprep.mubr.f32.mxu0 0.0
      %1229 = vmatmul.mubr.f32.gmra.mrb[0].mxu0 %v1059
      %v1230 = vpop.f32.mrb[0].mxu0
      %v1231 = vadd.f32 %v995, %v1230
      %v1232 = vpop.f32.mrb[0].mxu0
      %v1233 = vadd.f32 %v999, %v1232
      %1234 = vdwg.mxu0
      %1235 = vmatprep.subr.mxu0 %v1072
      %1236 = vmatpush1.msra.mxu0 %v1069
      %1237 = vmatprep.subr.mxu0 0.0
      %1238 = vmatpush1.msra.mxu0 0.0
      %1239 = vmatprep.subr.mxu0 0.0
      %1240 = vmatpush1.msra.mxu0 0.0
      %1241 = vmatprep.subr.mxu0 0.0
      %1242 = vmatpush1.msra.mxu0 0.0
      %1243 = vmatprep.subr.mxu0 0.0
      %1244 = vmatpush1.msra.mxu0 0.0
      %1245 = vmatprep.subr.mxu0 0.0
      %1246 = vmatpush1.msra.mxu0 0.0
      %1247 = vmatprep.subr.mxu0 0.0
      %1248 = vmatpush1.msra.mxu0 0.0
      %1249 = vmatprep.subr.mxu0 0.0
      %1250 = vmatpush1.msra.mxu0 0.0
      %1251 = vmatprep.subr.mxu0 0.0
      %1252 = vmatpush1.msra.mxu0 0.0
      %1253 = vmatprep.subr.mxu0 0.0
      %1254 = vmatpush1.msra.mxu0 0.0
      %1255 = vmatprep.subr.mxu0 0.0
      %1256 = vmatpush1.msra.mxu0 0.0
      %1257 = vmatprep.subr.mxu0 0.0
      %1258 = vmatpush1.msra.mxu0 0.0
      %1259 = vmatprep.subr.mxu0 0.0
      %1260 = vmatpush1.msra.mxu0 0.0
      %1261 = vmatprep.subr.mxu0 0.0
      %1262 = vmatpush1.msra.mxu0 0.0
      %1263 = vmatprep.subr.mxu0 0.0
      %1264 = vmatpush1.msra.mxu0 0.0
      %1265 = vmatprep.subr.mxu0 0.0
      %1266 = vmatpush1.msra.mxu0 0.0
      %1267 = vmatprep.subr.mxu0 0.0
      %1268 = vmatpush1.msra.mxu0 0.0
      %1269 = vmatprep.subr.mxu0 0.0
      %1270 = vmatpush1.msra.mxu0 0.0
      %1271 = vmatprep.subr.mxu0 0.0
      %1272 = vmatpush1.msra.mxu0 0.0
      %1273 = vmatprep.subr.mxu0 0.0
      %1274 = vmatpush1.msra.mxu0 0.0
      %1275 = vmatprep.subr.mxu0 0.0
      %1276 = vmatpush1.msra.mxu0 0.0
      %1277 = vmatprep.subr.mxu0 0.0
      %1278 = vmatpush1.msra.mxu0 0.0
      %1279 = vmatprep.subr.mxu0 0.0
      %1280 = vmatpush1.msra.mxu0 0.0
      %1281 = vmatprep.subr.mxu0 0.0
      %1282 = vmatpush1.msra.mxu0 0.0
      %1283 = vmatprep.subr.mxu0 0.0
      %1284 = vmatpush1.msra.mxu0 0.0
      %1285 = vmatprep.subr.mxu0 0.0
      %1286 = vmatpush1.msra.mxu0 0.0
      %1287 = vmatprep.subr.mxu0 0.0
      %1288 = vmatpush1.msra.mxu0 0.0
      %1289 = vmatprep.subr.mxu0 0.0
      %1290 = vmatpush1.msra.mxu0 0.0
      %1291 = vmatprep.subr.mxu0 0.0
      %1292 = vmatpush1.msra.mxu0 0.0
      %1293 = vmatprep.subr.mxu0 0.0
      %1294 = vmatpush1.msra.mxu0 0.0
      %1295 = vmatprep.subr.mxu0 0.0
      %1296 = vmatpush1.msra.mxu0 0.0
      %1297 = vmatprep.subr.mxu0 0.0
      %1298 = vmatpush1.msra.mxu0 0.0
      %1299 = vmatprep.mubr.f32.mxu0 0.0
      %1300 = vmatmul.mubr.f32.gmra.mrb[0].mxu0 %v1014
      %v1301 = vpop.f32.mrb[0].mxu0
      %v1302 = vadd.f32 %v1003, %v1301
      %v1303 = vpop.f32.mrb[0].mxu0
      %v1304 = vadd.f32 %v1007, %v1303
      %1305 = vmatprep.mubr.f32.mxu0 0.0
      %1306 = vmatmul.mubr.f32.gmra.mrb[0].mxu0 %v1017
      %v1307 = vpop.f32.mrb[0].mxu0
      %v1308 = vadd.f32 %v1003, %v1307
      %v1309 = vpop.f32.mrb[0].mxu0
      %v1310 = vadd.f32 %v1007, %v1309
      %1311 = vmatprep.mubr.f32.mxu0 0.0
      %1312 = vmatmul.mubr.f32.gmra.mrb[0].mxu0 %v1020
      %v1313 = vpop.f32.mrb[0].mxu0
      %v1314 = vadd.f32 %v1003, %v1313
      %v1315 = vpop.f32.mrb[0].mxu0
      %v1316 = vadd.f32 %v1007, %v1315
      %1317 = vmatprep.mubr.f32.mxu0 0.0
      %1318 = vmatmul.mubr.f32.gmra.mrb[0].mxu0 %v1023
      %v1319 = vpop.f32.mrb[0].mxu0
      %v1320 = vadd.f32 %v1003, %v1319
      %v1321 = vpop.f32.mrb[0].mxu0
      %v1322 = vadd.f32 %v1007, %v1321
      %1323 = vmatprep.mubr.f32.mxu0 0.0
      %1324 = vmatmul.mubr.f32.gmra.mrb[0].mxu0 %v1026
      %v1325 = vpop.f32.mrb[0].mxu0
      %v1326 = vadd.f32 %v1003, %v1325
      %v1327 = vpop.f32.mrb[0].mxu0
      %v1328 = vadd.f32 %v1007, %v1327
      %1329 = vmatprep.mubr.f32.mxu0 0.0
      %1330 = vmatmul.mubr.f32.gmra.mrb[0].mxu0 %v1029
      %v1331 = vpop.f32.mrb[0].mxu0
      %v1332 = vadd.f32 %v1003, %v1331
      %v1333 = vpop.f32.mrb[0].mxu0
      %v1334 = vadd.f32 %v1007, %v1333
      %1335 = vmatprep.mubr.f32.mxu0 0.0
      %1336 = vmatmul.mubr.f32.gmra.mrb[0].mxu0 %v1032
      %v1337 = vpop.f32.mrb[0].mxu0
      %v1338 = vadd.f32 %v1003, %v1337
      %v1339 = vpop.f32.mrb[0].mxu0
      %v1340 = vadd.f32 %v1007, %v1339
      %1341 = vmatprep.mubr.f32.mxu0 0.0
      %1342 = vmatmul.mubr.f32.gmra.mrb[0].mxu0 %v1035
      %v1343 = vpop.f32.mrb[0].mxu0
      %v1344 = vadd.f32 %v1003, %v1343
      %v1345 = vpop.f32.mrb[0].mxu0
      %v1346 = vadd.f32 %v1007, %v1345
      %1347 = vmatprep.mubr.f32.mxu0 0.0
      %1348 = vmatmul.mubr.f32.gmra.mrb[0].mxu0 %v1038
      %v1349 = vpop.f32.mrb[0].mxu0
      %v1350 = vadd.f32 %v1003, %v1349
      %v1351 = vpop.f32.mrb[0].mxu0
      %v1352 = vadd.f32 %v1007, %v1351
      %1353 = vmatprep.mubr.f32.mxu0 0.0
      %1354 = vmatmul.mubr.f32.gmra.mrb[0].mxu0 %v1041
      %v1355 = vpop.f32.mrb[0].mxu0
      %v1356 = vadd.f32 %v1003, %v1355
      %v1357 = vpop.f32.mrb[0].mxu0
      %v1358 = vadd.f32 %v1007, %v1357
      %1359 = vmatprep.mubr.f32.mxu0 0.0
      %1360 = vmatmul.mubr.f32.gmra.mrb[0].mxu0 %v1044
      %v1361 = vpop.f32.mrb[0].mxu0
      %v1362 = vadd.f32 %v1003, %v1361
      %v1363 = vpop.f32.mrb[0].mxu0
      %v1364 = vadd.f32 %v1007, %v1363
      %1365 = vmatprep.mubr.f32.mxu0 0.0
      %1366 = vmatmul.mubr.f32.gmra.mrb[0].mxu0 %v1047
      %v1367 = vpop.f32.mrb[0].mxu0
      %v1368 = vadd.f32 %v1003, %v1367
      %v1369 = vpop.f32.mrb[0].mxu0
      %v1370 = vadd.f32 %v1007, %v1369
      %1371 = vmatprep.mubr.f32.mxu0 0.0
      %1372 = vmatmul.mubr.f32.gmra.mrb[0].mxu0 %v1050
      %v1373 = vpop.f32.mrb[0].mxu0
      %v1374 = vadd.f32 %v1003, %v1373
      %v1375 = vpop.f32.mrb[0].mxu0
      %v1376 = vadd.f32 %v1007, %v1375
      %1377 = vmatprep.mubr.f32.mxu0 0.0
      %1378 = vmatmul.mubr.f32.gmra.mrb[0].mxu0 %v1053
      %v1379 = vpop.f32.mrb[0].mxu0
      %v1380 = vadd.f32 %v1003, %v1379
      %v1381 = vpop.f32.mrb[0].mxu0
      %v1382 = vadd.f32 %v1007, %v1381
      %1383 = vmatprep.mubr.f32.mxu0 0.0
      %1384 = vmatmul.mubr.f32.gmra.mrb[0].mxu0 %v1056
      %v1385 = vpop.f32.mrb[0].mxu0
      %v1386 = vadd.f32 %v1003, %v1385
      %v1387 = vpop.f32.mrb[0].mxu0
      %v1388 = vadd.f32 %v1007, %v1387
      %1389 = vmatprep.mubr.f32.mxu0 0.0
      %1390 = vmatmul.mubr.f32.gmra.mrb[0].mxu0 %v1059
      %v1391 = vpop.f32.mrb[0].mxu0
      %v1392 = vadd.f32 %v1003, %v1391
      %v1393 = vpop.f32.mrb[0].mxu0
      %v1394 = vadd.f32 %v1007, %v1393
      %1395 = vdwg.mxu0
      %v1396 = vtanh.pop %v1141
      %v1397 = vtanh.pop %v1143
      %v1398 = vtanh.pop %v1302
      %v1399 = vtanh.pop %v1304
      %v1400 = vtanh.pop %v1147
      %v1401 = vtanh.pop %v1149
      %v1402 = vtanh.pop %v1308
      %v1403 = vtanh.pop %v1310
      %v1404 = vtanh.pop %v1153
      %v1405 = vtanh.pop %v1155
      %v1406 = vtanh.pop %v1314
      %v1407 = vtanh.pop %v1316
      %v1408 = vtanh.pop %v1159
      %v1409 = vtanh.pop %v1161
      %v1410 = vtanh.pop %v1320
      %v1411 = vtanh.pop %v1322
      %v1412 = vtanh.pop %v1165
      %v1413 = vtanh.pop %v1167
      %v1414 = vtanh.pop %v1326
      %v1415 = vtanh.pop %v1328
      %v1416 = vtanh.pop %v1171
      %v1417 = vtanh.pop %v1173
      %v1418 = vtanh.pop %v1332
      %v1419 = vtanh.pop %v1334
      %v1420 = vtanh.pop %v1177
      %v1421 = vtanh.pop %v1179
      %v1422 = vtanh.pop %v1338
      %v1423 = vtanh.pop %v1340
      %v1424 = vtanh.pop %v1183
      %v1425 = vtanh.pop %v1185
      %v1426 = vtanh.pop %v1344
      %v1427 = vtanh.pop %v1346
      %v1428 = vtanh.pop %v1189
      %v1429 = vtanh.pop %v1191
      %v1430 = vtanh.pop %v1350
      %v1431 = vtanh.pop %v1352
      %v1432 = vtanh.pop %v1195
      %v1433 = vtanh.pop %v1197
      %v1434 = vtanh.pop %v1356
      %v1435 = vtanh.pop %v1358
      %v1436 = vtanh.pop %v1201
      %v1437 = vtanh.pop %v1203
      %v1438 = vtanh.pop %v1362
      %v1439 = vtanh.pop %v1364
      %v1440 = vtanh.pop %v1207
      %v1441 = vtanh.pop %v1209
      %v1442 = vtanh.pop %v1368
      %v1443 = vtanh.pop %v1370
      %v1444 = vtanh.pop %v1213
      %v1445 = vtanh.pop %v1215
      %v1446 = vtanh.pop %v1374
      %v1447 = vtanh.pop %v1376
      %v1448 = vtanh.pop %v1219
      %v1449 = vtanh.pop %v1221
      %v1450 = vtanh.pop %v1380
      %v1451 = vtanh.pop %v1382
      %v1452 = vtanh.pop %v1225
      %v1453 = vtanh.pop %v1227
      %v1454 = vtanh.pop %v1386
      %v1455 = vtanh.pop %v1388
      %v1456 = vtanh.pop %v1231
      %v1457 = vtanh.pop %v1233
      %v1458 = vtanh.pop %v1392
      %v1459 = vtanh.pop %v1394
      %1460 = vst [vmem:[%s285] sm:$0xff] %v1396
      %1461 = vst [vmem:[%s285 + $0x8] sm:$0xff] %v1397
      %1462 = vst [vmem:[%s285 + $0x10] sm:$0xff] %v1398
      %1463 = vst.msk [vmem:[%s285 + $0x18] sm:$0xff] %vm408, %v1399
      %1464 = vst [vmem:[%s285 + $0x20] sm:$0xff] %v1400
      %1465 = vst [vmem:[%s285 + $0x28] sm:$0xff] %v1401
      %1466 = vst [vmem:[%s285 + $0x30] sm:$0xff] %v1402
      %1467 = vst.msk [vmem:[%s285 + $0x38] sm:$0xff] %vm408, %v1403
      %1468 = vst [vmem:[%s285 + $0x40] sm:$0xff] %v1404
      %1469 = vst [vmem:[%s285 + $0x48] sm:$0xff] %v1405
      %1470 = vst [vmem:[%s285 + $0x50] sm:$0xff] %v1406
      %1471 = vst.msk [vmem:[%s285 + $0x58] sm:$0xff] %vm408, %v1407
      %1472 = vst [vmem:[%s285 + $0x60] sm:$0xff] %v1408
      %1473 = vst [vmem:[%s285 + $0x68] sm:$0xff] %v1409
      %1474 = vst [vmem:[%s285 + $0x70] sm:$0xff] %v1410
      %1475 = vst.msk [vmem:[%s285 + $0x78] sm:$0xff] %vm408, %v1411
      %1476 = vst [vmem:[%s285 + $0x80] sm:$0xff] %v1412
      %1477 = vst [vmem:[%s285 + $0x88] sm:$0xff] %v1413
      %1478 = vst [vmem:[%s285 + $0x90] sm:$0xff] %v1414
      %1479 = vst.msk [vmem:[%s285 + $0x98] sm:$0xff] %vm408, %v1415
      %1480 = vst [vmem:[%s285 + $0xa0] sm:$0xff] %v1416
      %1481 = vst [vmem:[%s285 + $0xa8] sm:$0xff] %v1417
      %1482 = vst [vmem:[%s285 + $0xb0] sm:$0xff] %v1418
      %1483 = vst.msk [vmem:[%s285 + $0xb8] sm:$0xff] %vm408, %v1419
      %1484 = vst [vmem:[%s285 + $0xc0] sm:$0xff] %v1420
      %1485 = vst [vmem:[%s285 + $0xc8] sm:$0xff] %v1421
      %1486 = vst [vmem:[%s285 + $0xd0] sm:$0xff] %v1422
      %1487 = vst.msk [vmem:[%s285 + $0xd8] sm:$0xff] %vm408, %v1423
      %1488 = vst [vmem:[%s285 + $0xe0] sm:$0xff] %v1424
      %1489 = vst [vmem:[%s285 + $0xe8] sm:$0xff] %v1425
      %1490 = vst [vmem:[%s285 + $0xf0] sm:$0xff] %v1426
      %1491 = vst.msk [vmem:[%s285 + $0xf8] sm:$0xff] %vm408, %v1427
      %1492 = vst [vmem:[%s285 + $0x100] sm:$0xff] %v1428
      %1493 = vst [vmem:[%s285 + $0x108] sm:$0xff] %v1429
      %1494 = vst [vmem:[%s285 + $0x110] sm:$0xff] %v1430
      %1495 = vst.msk [vmem:[%s285 + $0x118] sm:$0xff] %vm408, %v1431
      %1496 = vst [vmem:[%s285 + $0x120] sm:$0xff] %v1432
      %1497 = vst [vmem:[%s285 + $0x128] sm:$0xff] %v1433
      %1498 = vst [vmem:[%s285 + $0x130] sm:$0xff] %v1434
      %1499 = vst.msk [vmem:[%s285 + $0x138] sm:$0xff] %vm408, %v1435
      %1500 = vst [vmem:[%s285 + $0x140] sm:$0xff] %v1436
      %1501 = vst [vmem:[%s285 + $0x148] sm:$0xff] %v1437
      %1502 = vst [vmem:[%s285 + $0x150] sm:$0xff] %v1438
      %1503 = vst.msk [vmem:[%s285 + $0x158] sm:$0xff] %vm408, %v1439
      %1504 = vst [vmem:[%s285 + $0x160] sm:$0xff] %v1440
      %1505 = vst [vmem:[%s285 + $0x168] sm:$0xff] %v1441
      %1506 = vst [vmem:[%s285 + $0x170] sm:$0xff] %v1442
      %1507 = vst.msk [vmem:[%s285 + $0x178] sm:$0xff] %vm408, %v1443
      %1508 = vst [vmem:[%s285 + $0x180] sm:$0xff] %v1444
      %1509 = vst [vmem:[%s285 + $0x188] sm:$0xff] %v1445
      %1510 = vst [vmem:[%s285 + $0x190] sm:$0xff] %v1446
      %1511 = vst.msk [vmem:[%s285 + $0x198] sm:$0xff] %vm408, %v1447
      %1512 = vst [vmem:[%s285 + $0x1a0] sm:$0xff] %v1448
      %1513 = vst [vmem:[%s285 + $0x1a8] sm:$0xff] %v1449
      %1514 = vst [vmem:[%s285 + $0x1b0] sm:$0xff] %v1450
      %1515 = vst.msk [vmem:[%s285 + $0x1b8] sm:$0xff] %vm408, %v1451
      %1516 = vst [vmem:[%s285 + $0x1c0] sm:$0xff] %v1452
      %1517 = vst [vmem:[%s285 + $0x1c8] sm:$0xff] %v1453
      %1518 = vst [vmem:[%s285 + $0x1d0] sm:$0xff] %v1454
      %1519 = vst.msk [vmem:[%s285 + $0x1d8] sm:$0xff] %vm408, %v1455
      %1520 = vst [vmem:[%s285 + $0x1e0] sm:$0xff] %v1456
      %1521 = vst [vmem:[%s285 + $0x1e8] sm:$0xff] %v1457
      %1522 = vst [vmem:[%s285 + $0x1f0] sm:$0xff] %v1458
      %1523 = vst.msk [vmem:[%s285 + $0x1f8] sm:$0xff] %vm408, %v1459
      %s1524 = smul.u32 16, %s18
      %p1525 = scmp.lt.s32.totalorder %s1524, 31
      %s1526 = scalar_select %p1525, %s1524, 31
      %s1527 = smul.addr %s1526, 4
      %s1528 = smul.addr %s1527, 8
      %s1529 = scalar_lea.vmem %s7, %s1528
      // Predicated region
      $region49: #{reg_model3_forward.1} parent=47 // pred_check
        %p1530 = pneg %p188
      $region50: #{reg_model3_forward.1} parent=47 // pred_check_branch
        %1532 = sbr.rel (%p1530) target = $region52
      $region51: #{reg_model3_forward.1} parent=47 // pred_region
        %s1533 = smul.u32 16, %s18
      $region52: #{reg_model3_forward.1} parent=47 // pred_fallthru
        _
    $region48: #{reg_model3_forward.1} parent=5 // pred_fallthru
      _
    %p1534 = scmp.le.s32.totalorder 2, %s13
    // Predicated region
    $region53: #{reg_model3_forward.1} parent=5 // pred_check
      %p1535 = pneg %p1534
    $region54: #{reg_model3_forward.1} parent=5 // pred_check_branch
      %1537 = sbr.rel (%p1535) target = $region56
    $region55: #{reg_model3_forward.1} parent=5 // pred_region
      %s1538 = ssub.s32 %s13, 2
      // Predicated region
      $region57: #{reg_model3_forward.1} parent=55 // pred_check
        %p1539 = pneg %p194
      $region58: #{reg_model3_forward.1} parent=55 // pred_check_branch
        %1541 = sbr.rel (%p1539) target = $region60
      $region59: #{reg_model3_forward.1} parent=55 // pred_region
        %s1542 = smul.u32 16, %s19
        %p1543 = scmp.lt.s32.totalorder %s1542, 31
        %s1544 = scalar_select %p1543, %s1542, 31
        %s1545 = smul.addr %s1544, 4
        %s1546 = smul.addr %s1545, 8
        %s1547 = scalar_lea.vmem %s7, %s1546
      $region60: #{reg_model3_forward.1} parent=55 // pred_fallthru
        _
    $region56: #{reg_model3_forward.1} parent=5 // pred_fallthru
      _
  $region6: #{reg_model3_forward.1} parent=0 // loop_footer
    %s17 = sadd.s32 1, %s13
  $region7: #{reg_model3_forward.1} parent=0 // loop_footer_branch
    %12 = sbr.rel target = $region3
  $region8: #{reg_model3_forward.1} parent=0 // loop_exit
    _

</llo_original>
